<compile_context>
chip_gen: v7x
topology: tpu7x:2x2x1
jax: 0.10.0
libtpu: 0.0.40
codegen_flags: <defaults>
</compile_context>

<pallas_src>
import functools

import jax
import jax.numpy as jnp
from jax.experimental import pallas as pl
from jax.experimental.pallas import tpu as pltpu

LANE = 128
B_TILE = 16   # bf16 packed sublane tile (2 rows per 32-bit sublane) -> keeps every
              # bf16 block / scratch store tile-aligned.


def _round_up(x, m):
    return (x + m - 1) // m * m


def _pick_time_chunk(T, max_chunk=32):
    limit = min(T, max_chunk)
    for d in range(limit, 0, -1):
        if T % d == 0 and 2 * d >= limit:
            return d                      # good divisor: no padded tail steps
    n_chunks = -(-T // limit)
    return -(-T // n_chunks)              # minimal padding; tail steps masked in-kernel


# ----------------------------------------------------------------------------
# Fused kernel: all LSTM layers + classifier, one time-chunk per grid step.
# ----------------------------------------------------------------------------
def _fused_lstm_kernel(x_ref, wih_ref, whh_ref, b_ref, wc_ref, bc_ref, out_ref,
                       h_state, c_state, seq_buf,
                       *, n_layer, t_chunk, b_pad, hidden, seq_len, mask_tail):
    """
    x_ref   : (t_chunk*b_pad, D_in_pad)  time-major input chunk (bf16)
    wih_ref : (L, D_rows, G_pad)         input->gate weights, packed gates i|f|o|g (bf16)
    whh_ref : (L, H, G_pad)              hidden->gate weights, packed gates i|f|o|g (bf16)
    b_ref   : (L, 1, G_pad)              combined bias b_ih + b_hh (f32)
    wc_ref  : (H, C_pad)                 classifier weight (bf16)
    bc_ref  : (1, C_pad)                 classifier bias (f32)
    out_ref : (b_pad, C_pad)             logits, written only at the last chunk
    h_state, c_state : (L, b_pad, H)     persistent recurrent state (f32 scratch)
    seq_buf : (t_chunk*b_pad, H)         layer l hidden seq -> layer l+1 input (bf16 scratch)
    """
    H = hidden
    chunk = pl.program_id(0)

    @pl.when(chunk == 0)
    def _init_state():
        h_state[...] = jnp.zeros_like(h_state)
        c_state[...] = jnp.zeros_like(c_state)

    seq = x_ref[...]                                    # bf16, no per-chunk cast needed
    h_last = None
    for layer in range(n_layer):                        # static layer loop (fused stack)
        d_in = seq.shape[1]
        wih = wih_ref[layer][:d_in, :]                  # (d_in, G_pad) bf16
        whh = whh_ref[layer]                            # (H, G_pad) bf16
        bias = b_ref[layer]                             # (1, G_pad) f32

        # Hoisted input projection: one large MXU matmul for the whole chunk,
        # removing one matmul from the serial h->h critical path.
        xp = jnp.dot(seq, wih, preferred_element_type=jnp.float32) + bias

        h = h_state[layer]                              # (b_pad, H) f32
        c = c_state[layer]
        # Fully unrolled recurrence (t_chunk is a small compile-time constant);
        # all slice starts are static multiples of the sublane tile.
        for t in range(t_chunk):
            gates = xp[t * b_pad:(t + 1) * b_pad, :] + jnp.dot(
                h.astype(whh.dtype), whh, preferred_element_type=jnp.float32)
            # Packed gate layout [i | f | o | g] at natural width H: one contiguous
            # sigmoid slab + one tanh slab (4x less MXU/EUP/VPU work vs per-gate
            # 128-lane padding when H < 128).
            sig = jax.nn.sigmoid(gates[:, :3 * H])
            i_g = sig[:, 0 * H:1 * H]
            f_g = sig[:, 1 * H:2 * H]
            o_g = sig[:, 2 * H:3 * H]
            g_g = jnp.tanh(gates[:, 3 * H:4 * H])
            c_new = f_g * c + i_g * g_g
            h_new = o_g * jnp.tanh(c_new)
            if mask_tail:                               # only traced when T was padded up
                valid = chunk * t_chunk + t < seq_len
                c_new = jnp.where(valid, c_new, c)
                h_new = jnp.where(valid, h_new, h)
            c = c_new
            h = h_new
            if layer < n_layer - 1:
                # VMEM scratch (not a Python list + concat): bounds vreg live ranges
                # across the unrolled loop and feeds the next layer without a copy.
                seq_buf[t * b_pad:(t + 1) * b_pad, :] = h.astype(seq_buf.dtype)
        h_state[layer] = h
        c_state[layer] = c
        if layer < n_layer - 1:
            seq = seq_buf[...]                          # (t_chunk*b_pad, H) bf16
        else:
            h_last = h                                  # only t = T-1 is consumed downstream

    # Classifier fused into the last chunk's epilogue; the last layer's hidden
    # sequence is never written to HBM. The constant-index output block stays
    # resident in VMEM across the grid and is written back once after the final
    # grid step (standard Pallas output-revisit semantics).
    @pl.when(chunk == pl.num_programs(0) - 1)
    def _classify():
        logits = jnp.dot(h_last.astype(wc_ref.dtype), wc_ref[...],
                         preferred_element_type=jnp.float32) + bc_ref[...]
        out_ref[...] = logits.astype(out_ref.dtype)


# ----------------------------------------------------------------------------
# One-time weight packing (transpose, gate reorder i,f,g,o -> i,f,o,g, pack, bf16)
# ----------------------------------------------------------------------------
def pack_params(lstm_params, clf_params, in_dim, hidden_dim):
    assert len(lstm_params) >= 1
    H = hidden_dim
    GW = 4 * H
    G_pad = _round_up(GW, LANE)
    D_in_pad = _round_up(in_dim, B_TILE)
    D_rows = max(D_in_pad, _round_up(H, B_TILE))
    n_layer = len(lstm_params)

    # Gates are packed at natural width H (gate order i|f|o|g so the sigmoid gates
    # form one contiguous slab); only the trailing G_pad - 4H lanes are zero padding.
    def gates_packed(w, rows, rows_pad):
        # w: (4H, rows) PyTorch layout, gate order (i, f, g, o)
        wi, wf, wg, wo = jnp.split(w, 4, axis=0)
        packed = jnp.concatenate([wi.T, wf.T, wo.T, wg.T], axis=1)   # (rows, 4H)
        return jnp.pad(packed, ((0, rows_pad - rows), (0, G_pad - GW)))

    def bias_packed(b):
        bi, bf, bg, bo = jnp.split(b, 4)
        return jnp.pad(jnp.concatenate([bi, bf, bo, bg]), (0, G_pad - GW))

    wih_l, whh_l, b_l = [], [], []
    for layer, (w_ih, w_hh, b_ih, b_hh) in enumerate(lstm_params):
        d_in = in_dim if layer == 0 else H
        wih_l.append(gates_packed(w_ih, d_in, D_rows))
        whh_l.append(gates_packed(w_hh, H, H))
        b_l.append(bias_packed(b_ih + b_hh))

    w_c, b_c = clf_params
    n_class = w_c.shape[0]
    C_pad = _round_up(n_class, LANE)

    # Zero-padding invariants the kernel relies on (do not change silently):
    #  * the trailing G_pad - 4H gate columns are never read by the kernel;
    #  * padded layer-0 weight rows line up with zero-padded input feature lanes;
    #  * padded batch rows are dropped by the wrapper's final [:B] slice.
    packed = dict(
        wih=jnp.stack(wih_l).astype(jnp.bfloat16),              # (L, D_rows, G_pad)
        whh=jnp.stack(whh_l).astype(jnp.bfloat16),              # (L, H, G_pad)
        b=jnp.stack(b_l)[:, None, :].astype(jnp.float32),       # (L, 1, G_pad)
        wc=jnp.pad(w_c.T, ((0, 0), (0, C_pad - n_class))).astype(jnp.bfloat16),  # (H, C_pad)
        bc=jnp.pad(b_c, (0, C_pad - n_class))[None, :].astype(jnp.float32),      # (1, C_pad)
    )
    meta = dict(n_layer=n_layer, hidden=H, in_dim=in_dim, D_rows=D_rows,
                D_in_pad=D_in_pad, G_pad=G_pad, C_pad=C_pad, n_class=n_class)
    return packed, meta


# ----------------------------------------------------------------------------
# Wrapper
# ----------------------------------------------------------------------------
def make_rnn_forward(meta):
    n_layer = meta["n_layer"]
    H, D_rows, D_in_pad = meta["hidden"], meta["D_rows"], meta["D_in_pad"]
    G_pad, C_pad, n_class = meta["G_pad"], meta["C_pad"], meta["n_class"]

    def fwd(x, packed):
        B, T, in_dim = x.shape
        B_pad = _round_up(B, B_TILE)
        t_chunk = _pick_time_chunk(T)
        n_chunks = -(-T // t_chunk)
        T_pad = n_chunks * t_chunk
        mask_tail = T_pad != T

        # batch-first -> time-major, streamed as bf16 (halves the only per-grid-step
        # HBM->VMEM DMA), padded only to small tiles (16 rows / 16 feature lanes) and
        # flattened to a lane/sublane-dense 2-D slab.
        xt = jnp.transpose(x, (1, 0, 2)).astype(jnp.bfloat16)
        xt = jnp.pad(xt, ((0, T_pad - T), (0, B_pad - B), (0, D_in_pad - in_dim)))
        x2d = xt.reshape(T_pad * B_pad, D_in_pad)

        kernel = functools.partial(
            _fused_lstm_kernel, n_layer=n_layer, t_chunk=t_chunk, b_pad=B_pad,
            hidden=H, seq_len=T, mask_tail=mask_tail)

        # Explicit VMEM budget: (double-buffered) weights + input/output blocks,
        # persistent scratch, xp/gate temporaries, with 2x headroom.
        w_bytes = 2 * (n_layer * D_rows * G_pad + n_layer * H * G_pad + H * C_pad) \
            + 4 * (n_layer * G_pad + C_pad)
        in_blk = t_chunk * B_pad * D_in_pad * 2
        out_blk = B_pad * C_pad * 4
        scratch = 2 * n_layer * B_pad * H * 4 + t_chunk * B_pad * H * 2
        temps = 3 * t_chunk * B_pad * G_pad * 4
        est = 2 * (w_bytes + in_blk + out_blk) + scratch + temps
        vmem_limit = int(min(96 * 2**20, max(32 * 2**20, 2 * est)))

        out_pad = pl.pallas_call(
            kernel,
            out_shape=jax.ShapeDtypeStruct((B_pad, C_pad), jnp.float32),
            grid_spec=pltpu.PrefetchScalarGridSpec(
                num_scalar_prefetch=0,
                grid=(n_chunks,),
                in_specs=[
                    pl.BlockSpec((t_chunk * B_pad, D_in_pad), lambda c: (c, 0)),
                    pl.BlockSpec((n_layer, D_rows, G_pad), lambda c: (0, 0, 0)),
                    pl.BlockSpec((n_layer, H, G_pad), lambda c: (0, 0, 0)),
                    pl.BlockSpec((n_layer, 1, G_pad), lambda c: (0, 0, 0)),
                    pl.BlockSpec((H, C_pad), lambda c: (0, 0)),
                    pl.BlockSpec((1, C_pad), lambda c: (0, 0)),
                ],
                out_specs=pl.BlockSpec((B_pad, C_pad), lambda c: (0, 0)),
                scratch_shapes=[
                    pltpu.VMEM((n_layer, B_pad, H), jnp.float32),       # h state
                    pltpu.VMEM((n_layer, B_pad, H), jnp.float32),       # c state
                    pltpu.VMEM((t_chunk * B_pad, H), jnp.bfloat16),     # inter-layer seq
                ],
            ),
            compiler_params=pltpu.CompilerParams(
                dimension_semantics=("arbitrary",),
                vmem_limit_bytes=vmem_limit),
        )(x2d, packed["wih"], packed["whh"], packed["b"],
          packed["wc"], packed["bc"])

        return out_pad[:B, :n_class]

    return jax.jit(fwd)


# ----------------------------------------------------------------------------
# Pure-JAX reference (PyTorch semantics); matmul_dtype=bf16 mimics kernel numerics.
# ----------------------------------------------------------------------------
def rnn_reference(x, lstm_params, clf_params, matmul_dtype=jnp.float32):
    B, T, _ = x.shape

    def mm(a, w_t):
        return jnp.dot(a.astype(matmul_dtype), w_t.astype(matmul_dtype),
                       preferred_element_type=jnp.float32)

    seq = x.astype(jnp.float32)
    for (w_ih, w_hh, b_ih, b_hh) in lstm_params:
        H = w_hh.shape[1]
        bias = (b_ih + b_hh).astype(jnp.float32)
        h = jnp.zeros((B, H), jnp.float32)
        c = jnp.zeros((B, H), jnp.float32)
        hs = []
        for t in range(T):
            gates = mm(seq[:, t, :], w_ih.T) + mm(h, w_hh.T) + bias
            i_g = jax.nn.sigmoid(gates[:, 0 * H:1 * H])
            f_g = jax.nn.sigmoid(gates[:, 1 * H:2 * H])
            g_g = jnp.tanh(gates[:, 2 * H:3 * H])
            o_g = jax.nn.sigmoid(gates[:, 3 * H:4 * H])
            c = f_g * c + i_g * g_g
            h = o_g * jnp.tanh(c)
            hs.append(h)
        seq = jnp.stack(hs, axis=1)
    w_c, b_c = clf_params
    return mm(seq[:, -1, :], w_c.T) + b_c


# ----------------------------------------------------------------------------
# Parameter init (deterministic, PyTorch-style uniform(-1/sqrt(H), 1/sqrt(H)))
# ----------------------------------------------------------------------------
def init_params(key, in_dim, hidden_dim, n_layer, n_class):
    bound = 1.0 / jnp.sqrt(jnp.float32(hidden_dim))
    lstm_params = []
    for layer in range(n_layer):
        d_in = in_dim if layer == 0 else hidden_dim
        key, k1, k2, k3, k4 = jax.random.split(key, 5)
        w_ih = jax.random.uniform(k1, (4 * hidden_dim, d_in), jnp.float32, -bound, bound)
        w_hh = jax.random.uniform(k2, (4 * hidden_dim, hidden_dim), jnp.float32, -bound, bound)
        b_ih = jax.random.uniform(k3, (4 * hidden_dim,), jnp.float32, -bound, bound)
        b_hh = jax.random.uniform(k4, (4 * hidden_dim,), jnp.float32, -bound, bound)
        lstm_params.append((w_ih, w_hh, b_ih, b_hh))
    key, k1, k2 = jax.random.split(key, 3)
    w_c = jax.random.uniform(k1, (n_class, hidden_dim), jnp.float32, -bound, bound)
    b_c = jax.random.uniform(k2, (n_class,), jnp.float32, -bound, bound)
    return lstm_params, (w_c, b_c)


# ----------------------------------------------------------------------------
if __name__ == "__main__":
    B, T, IN_DIM, HIDDEN, N_LAYER, N_CLASS = 2, 8, 16, 32, 2, 10

    key = jax.random.PRNGKey(0)
    key, xkey = jax.random.split(key)
    x = jax.random.normal(xkey, (B, T, IN_DIM), jnp.float32)

    lstm_params, clf_params = init_params(key, IN_DIM, HIDDEN, N_LAYER, N_CLASS)
    packed, meta = pack_params(lstm_params, clf_params, IN_DIM, HIDDEN)

    fwd = make_rnn_forward(meta)
    out = jax.block_until_ready(fwd(x, packed))
    assert out.shape == (B, N_CLASS), out.shape

    # Tight check against a reference that mirrors the kernel's bf16-matmul /
    # f32-accumulate numerics, plus a looser check against pure-f32 PyTorch math.
    ref_mixed = rnn_reference(x, lstm_params, clf_params, matmul_dtype=jnp.bfloat16)
    ref_f32 = rnn_reference(x, lstm_params, clf_params, matmul_dtype=jnp.float32)

    err_mixed = float(jnp.max(jnp.abs(out - ref_mixed)))
    err_f32 = float(jnp.max(jnp.abs(out - ref_f32)))
    assert jnp.allclose(out, ref_mixed, atol=1e-3, rtol=1e-3), (
        f"mixed-precision mismatch: max abs err {err_mixed}")
    assert jnp.allclose(out, ref_f32, atol=3e-2, rtol=3e-2), (
        f"f32 reference mismatch: max abs err {err_f32}")

    print("KERNEL_OK")
</pallas_src>

<mosaic_0001>
module attributes {stable_mosaic.version = 11 : i64} {
  func.func @_fused_lstm_kernel(%arg0: i32, %arg1: memref<128x16xbf16, #tpu.memory_space<vmem>>, %arg2: memref<2x32x128xbf16, #tpu.memory_space<vmem>>, %arg3: memref<2x32x128xbf16, #tpu.memory_space<vmem>>, %arg4: memref<2x1x128xf32, #tpu.memory_space<vmem>>, %arg5: memref<32x128xbf16, #tpu.memory_space<vmem>>, %arg6: memref<1x128xf32, #tpu.memory_space<vmem>>, %arg7: memref<16x128xf32, #tpu.memory_space<vmem>>, %arg8: memref<2x16x32xf32, #tpu.memory_space<vmem>>, %arg9: memref<2x16x32xf32, #tpu.memory_space<vmem>>, %arg10: memref<128x32xbf16, #tpu.memory_space<vmem>>) attributes {dimension_semantics = [#tpu.dimension_semantics<arbitrary>], iteration_bounds = array<i64: 1>, scalar_prefetch = 0 : i64, scratch_operands = 3 : i64, tpu.core_type = #tpu.core_type<tc>, window_params = [{transform_indices = @transform_0, window_bounds = array<i64: 128, 16>}, {pipeline_mode = #tpu.pipeline_mode<synchronous>, transform_indices = @transform_1, window_bounds = array<i64: 2, 32, 128>}, {pipeline_mode = #tpu.pipeline_mode<synchronous>, transform_indices = @transform_2, window_bounds = array<i64: 2, 32, 128>}, {pipeline_mode = #tpu.pipeline_mode<synchronous>, transform_indices = @transform_3, window_bounds = array<i64: 2, 1, 128>}, {pipeline_mode = #tpu.pipeline_mode<synchronous>, transform_indices = @transform_4, window_bounds = array<i64: 32, 128>}, {pipeline_mode = #tpu.pipeline_mode<synchronous>, transform_indices = @transform_5, window_bounds = array<i64: 1, 128>}, {pipeline_mode = #tpu.pipeline_mode<synchronous>, transform_indices = @transform_6, window_bounds = array<i64: 16, 128>}]} {
    %c0_i32 = arith.constant 0 : i32
    %0 = arith.cmpi eq, %arg0, %c0_i32 : i32
    %1 = arith.extui %0 : i1 to i32
    %c0_i32_0 = arith.constant 0 : i32
    %2 = arith.cmpi ne, %1, %c0_i32_0 : i32
    scf.if %2 {
      %cst_89 = arith.constant 0.000000e+00 : f32
      %383 = vector.broadcast %cst_89 : f32 to vector<2x16x32xf32>
      %c0_90 = arith.constant 0 : index
      %c0_91 = arith.constant 0 : index
      %c0_92 = arith.constant 0 : index
      %384 = vector.load %arg8[%c0_90, %c0_91, %c0_92] : memref<2x16x32xf32, #tpu.memory_space<vmem>>, vector<2x16x32xf32>
      tpu.vector_store %arg8[%c0_90, %c0_91, %c0_92], %383 {strides = array<i32>} : memref<2x16x32xf32, #tpu.memory_space<vmem>>, vector<2x16x32xf32>,
      %cst_93 = arith.constant 0.000000e+00 : f32
      %385 = vector.broadcast %cst_93 : f32 to vector<2x16x32xf32>
      %c0_94 = arith.constant 0 : index
      %c0_95 = arith.constant 0 : index
      %c0_96 = arith.constant 0 : index
      %386 = vector.load %arg9[%c0_94, %c0_95, %c0_96] : memref<2x16x32xf32, #tpu.memory_space<vmem>>, vector<2x16x32xf32>
      tpu.vector_store %arg9[%c0_94, %c0_95, %c0_96], %385 {strides = array<i32>} : memref<2x16x32xf32, #tpu.memory_space<vmem>>, vector<2x16x32xf32>,
    } else {
    }
    %c0 = arith.constant 0 : index
    %c0_1 = arith.constant 0 : index
    %3 = vector.load %arg1[%c0, %c0_1] : memref<128x16xbf16, #tpu.memory_space<vmem>>, vector<128x16xbf16>
    %c0_2 = arith.constant 0 : index
    %c0_3 = arith.constant 0 : index
    %c0_4 = arith.constant 0 : index
    %4 = vector.load %arg2[%c0_2, %c0_3, %c0_4] : memref<2x32x128xbf16, #tpu.memory_space<vmem>>, vector<1x32x128xbf16>
    %5 = vector.shape_cast %4 : vector<1x32x128xbf16> to vector<32x128xbf16>
    %6 = vector.extract_strided_slice %5 {offsets = [0, 0], sizes = [16, 128], strides = [1, 1]} : vector<32x128xbf16> to vector<16x128xbf16>
    %c0_5 = arith.constant 0 : index
    %c0_6 = arith.constant 0 : index
    %c0_7 = arith.constant 0 : index
    %7 = vector.load %arg3[%c0_5, %c0_6, %c0_7] : memref<2x32x128xbf16, #tpu.memory_space<vmem>>, vector<1x32x128xbf16>
    %8 = vector.shape_cast %7 : vector<1x32x128xbf16> to vector<32x128xbf16>
    %c0_8 = arith.constant 0 : index
    %c0_9 = arith.constant 0 : index
    %c0_10 = arith.constant 0 : index
    %9 = vector.load %arg4[%c0_8, %c0_9, %c0_10] : memref<2x1x128xf32, #tpu.memory_space<vmem>>, vector<1x1x128xf32>
    %10 = vector.shape_cast %9 : vector<1x1x128xf32> to vector<1x128xf32>
    %cst = arith.constant dense<0.000000e+00> : vector<128x128xf32>
    %11 = tpu.matmul %3, %6, %cst {dimension_numbers = #tpu.dot_dimension_numbers<[1], [0], [0], [1], [0, 0, 1, 1], [], []>} : vector<128x16xbf16>, vector<16x128xbf16>, vector<128x128xf32> -> vector<128x128xf32>
    %12 = vector.broadcast %10 : vector<1x128xf32> to vector<128x128xf32>
    %13 = arith.addf %11, %12 : vector<128x128xf32>
    %c0_11 = arith.constant 0 : index
    %c0_12 = arith.constant 0 : index
    %c0_13 = arith.constant 0 : index
    %14 = vector.load %arg8[%c0_11, %c0_12, %c0_13] : memref<2x16x32xf32, #tpu.memory_space<vmem>>, vector<1x16x32xf32>
    %15 = vector.shape_cast %14 : vector<1x16x32xf32> to vector<16x32xf32>
    %c0_14 = arith.constant 0 : index
    %c0_15 = arith.constant 0 : index
    %c0_16 = arith.constant 0 : index
    %16 = vector.load %arg9[%c0_14, %c0_15, %c0_16] : memref<2x16x32xf32, #tpu.memory_space<vmem>>, vector<1x16x32xf32>
    %17 = vector.shape_cast %16 : vector<1x16x32xf32> to vector<16x32xf32>
    %18 = vector.extract_strided_slice %13 {offsets = [0, 0], sizes = [16, 128], strides = [1, 1]} : vector<128x128xf32> to vector<16x128xf32>
    %19 = arith.truncf %15 : vector<16x32xf32> to vector<16x32xbf16>
    %cst_17 = arith.constant dense<0.000000e+00> : vector<16x128xf32>
    %20 = tpu.matmul %19, %8, %cst_17 {dimension_numbers = #tpu.dot_dimension_numbers<[1], [0], [0], [1], [0, 0, 1, 1], [], []>} : vector<16x32xbf16>, vector<32x128xbf16>, vector<16x128xf32> -> vector<16x128xf32>
    %21 = arith.addf %18, %20 : vector<16x128xf32>
    %22 = vector.extract_strided_slice %21 {offsets = [0, 0], sizes = [16, 96], strides = [1, 1]} : vector<16x128xf32> to vector<16x96xf32>
    %23 = arith.negf %22 : vector<16x96xf32>
    %24 = math.exp %23 : vector<16x96xf32>
    %cst_18 = arith.constant 1.000000e+00 : f32
    %25 = vector.broadcast %cst_18 : f32 to vector<16x96xf32>
    %26 = arith.addf %25, %24 : vector<16x96xf32>
    %27 = arith.divf %25, %26 : vector<16x96xf32>
    %28 = vector.extract_strided_slice %27 {offsets = [0, 0], sizes = [16, 32], strides = [1, 1]} : vector<16x96xf32> to vector<16x32xf32>
    %29 = vector.extract_strided_slice %27 {offsets = [0, 32], sizes = [16, 32], strides = [1, 1]} : vector<16x96xf32> to vector<16x32xf32>
    %30 = vector.extract_strided_slice %27 {offsets = [0, 64], sizes = [16, 32], strides = [1, 1]} : vector<16x96xf32> to vector<16x32xf32>
    %31 = vector.extract_strided_slice %21 {offsets = [0, 96], sizes = [16, 32], strides = [1, 1]} : vector<16x128xf32> to vector<16x32xf32>
    %32 = math.tanh %31 : vector<16x32xf32>
    %33 = arith.mulf %29, %17 : vector<16x32xf32>
    %34 = arith.mulf %28, %32 : vector<16x32xf32>
    %35 = arith.addf %33, %34 : vector<16x32xf32>
    %36 = math.tanh %35 : vector<16x32xf32>
    %37 = arith.mulf %30, %36 : vector<16x32xf32>
    %38 = arith.truncf %37 : vector<16x32xf32> to vector<16x32xbf16>
    %c0_19 = arith.constant 0 : index
    %c0_20 = arith.constant 0 : index
    %39 = vector.load %arg10[%c0_19, %c0_20] : memref<128x32xbf16, #tpu.memory_space<vmem>>, vector<16x32xbf16>
    tpu.vector_store %arg10[%c0_19, %c0_20], %38 {strides = array<i32>} : memref<128x32xbf16, #tpu.memory_space<vmem>>, vector<16x32xbf16>,
    %40 = vector.extract_strided_slice %13 {offsets = [16, 0], sizes = [16, 128], strides = [1, 1]} : vector<128x128xf32> to vector<16x128xf32>
    %41 = arith.truncf %37 : vector<16x32xf32> to vector<16x32xbf16>
    %cst_21 = arith.constant dense<0.000000e+00> : vector<16x128xf32>
    %42 = tpu.matmul %41, %8, %cst_21 {dimension_numbers = #tpu.dot_dimension_numbers<[1], [0], [0], [1], [0, 0, 1, 1], [], []>} : vector<16x32xbf16>, vector<32x128xbf16>, vector<16x128xf32> -> vector<16x128xf32>
    %43 = arith.addf %40, %42 : vector<16x128xf32>
    %44 = vector.extract_strided_slice %43 {offsets = [0, 0], sizes = [16, 96], strides = [1, 1]} : vector<16x128xf32> to vector<16x96xf32>
    %45 = arith.negf %44 : vector<16x96xf32>
    %46 = math.exp %45 : vector<16x96xf32>
    %cst_22 = arith.constant 1.000000e+00 : f32
    %47 = vector.broadcast %cst_22 : f32 to vector<16x96xf32>
    %48 = arith.addf %47, %46 : vector<16x96xf32>
    %49 = arith.divf %47, %48 : vector<16x96xf32>
    %50 = vector.extract_strided_slice %49 {offsets = [0, 0], sizes = [16, 32], strides = [1, 1]} : vector<16x96xf32> to vector<16x32xf32>
    %51 = vector.extract_strided_slice %49 {offsets = [0, 32], sizes = [16, 32], strides = [1, 1]} : vector<16x96xf32> to vector<16x32xf32>
    %52 = vector.extract_strided_slice %49 {offsets = [0, 64], sizes = [16, 32], strides = [1, 1]} : vector<16x96xf32> to vector<16x32xf32>
    %53 = vector.extract_strided_slice %43 {offsets = [0, 96], sizes = [16, 32], strides = [1, 1]} : vector<16x128xf32> to vector<16x32xf32>
    %54 = math.tanh %53 : vector<16x32xf32>
    %55 = arith.mulf %51, %35 : vector<16x32xf32>
    %56 = arith.mulf %50, %54 : vector<16x32xf32>
    %57 = arith.addf %55, %56 : vector<16x32xf32>
    %58 = math.tanh %57 : vector<16x32xf32>
    %59 = arith.mulf %52, %58 : vector<16x32xf32>
    %60 = arith.truncf %59 : vector<16x32xf32> to vector<16x32xbf16>
    %c16 = arith.constant 16 : index
    %c0_23 = arith.constant 0 : index
    %61 = vector.load %arg10[%c16, %c0_23] : memref<128x32xbf16, #tpu.memory_space<vmem>>, vector<16x32xbf16>
    tpu.vector_store %arg10[%c16, %c0_23], %60 {strides = array<i32>} : memref<128x32xbf16, #tpu.memory_space<vmem>>, vector<16x32xbf16>,
    %62 = vector.extract_strided_slice %13 {offsets = [32, 0], sizes = [16, 128], strides = [1, 1]} : vector<128x128xf32> to vector<16x128xf32>
    %63 = arith.truncf %59 : vector<16x32xf32> to vector<16x32xbf16>
    %cst_24 = arith.constant dense<0.000000e+00> : vector<16x128xf32>
    %64 = tpu.matmul %63, %8, %cst_24 {dimension_numbers = #tpu.dot_dimension_numbers<[1], [0], [0], [1], [0, 0, 1, 1], [], []>} : vector<16x32xbf16>, vector<32x128xbf16>, vector<16x128xf32> -> vector<16x128xf32>
    %65 = arith.addf %62, %64 : vector<16x128xf32>
    %66 = vector.extract_strided_slice %65 {offsets = [0, 0], sizes = [16, 96], strides = [1, 1]} : vector<16x128xf32> to vector<16x96xf32>
    %67 = arith.negf %66 : vector<16x96xf32>
    %68 = math.exp %67 : vector<16x96xf32>
    %cst_25 = arith.constant 1.000000e+00 : f32
    %69 = vector.broadcast %cst_25 : f32 to vector<16x96xf32>
    %70 = arith.addf %69, %68 : vector<16x96xf32>
    %71 = arith.divf %69, %70 : vector<16x96xf32>
    %72 = vector.extract_strided_slice %71 {offsets = [0, 0], sizes = [16, 32], strides = [1, 1]} : vector<16x96xf32> to vector<16x32xf32>
    %73 = vector.extract_strided_slice %71 {offsets = [0, 32], sizes = [16, 32], strides = [1, 1]} : vector<16x96xf32> to vector<16x32xf32>
    %74 = vector.extract_strided_slice %71 {offsets = [0, 64], sizes = [16, 32], strides = [1, 1]} : vector<16x96xf32> to vector<16x32xf32>
    %75 = vector.extract_strided_slice %65 {offsets = [0, 96], sizes = [16, 32], strides = [1, 1]} : vector<16x128xf32> to vector<16x32xf32>
    %76 = math.tanh %75 : vector<16x32xf32>
    %77 = arith.mulf %73, %57 : vector<16x32xf32>
    %78 = arith.mulf %72, %76 : vector<16x32xf32>
    %79 = arith.addf %77, %78 : vector<16x32xf32>
    %80 = math.tanh %79 : vector<16x32xf32>
    %81 = arith.mulf %74, %80 : vector<16x32xf32>
    %82 = arith.truncf %81 : vector<16x32xf32> to vector<16x32xbf16>
    %c32 = arith.constant 32 : index
    %c0_26 = arith.constant 0 : index
    %83 = vector.load %arg10[%c32, %c0_26] : memref<128x32xbf16, #tpu.memory_space<vmem>>, vector<16x32xbf16>
    tpu.vector_store %arg10[%c32, %c0_26], %82 {strides = array<i32>} : memref<128x32xbf16, #tpu.memory_space<vmem>>, vector<16x32xbf16>,
    %84 = vector.extract_strided_slice %13 {offsets = [48, 0], sizes = [16, 128], strides = [1, 1]} : vector<128x128xf32> to vector<16x128xf32>
    %85 = arith.truncf %81 : vector<16x32xf32> to vector<16x32xbf16>
    %cst_27 = arith.constant dense<0.000000e+00> : vector<16x128xf32>
    %86 = tpu.matmul %85, %8, %cst_27 {dimension_numbers = #tpu.dot_dimension_numbers<[1], [0], [0], [1], [0, 0, 1, 1], [], []>} : vector<16x32xbf16>, vector<32x128xbf16>, vector<16x128xf32> -> vector<16x128xf32>
    %87 = arith.addf %84, %86 : vector<16x128xf32>
    %88 = vector.extract_strided_slice %87 {offsets = [0, 0], sizes = [16, 96], strides = [1, 1]} : vector<16x128xf32> to vector<16x96xf32>
    %89 = arith.negf %88 : vector<16x96xf32>
    %90 = math.exp %89 : vector<16x96xf32>
    %cst_28 = arith.constant 1.000000e+00 : f32
    %91 = vector.broadcast %cst_28 : f32 to vector<16x96xf32>
    %92 = arith.addf %91, %90 : vector<16x96xf32>
    %93 = arith.divf %91, %92 : vector<16x96xf32>
    %94 = vector.extract_strided_slice %93 {offsets = [0, 0], sizes = [16, 32], strides = [1, 1]} : vector<16x96xf32> to vector<16x32xf32>
    %95 = vector.extract_strided_slice %93 {offsets = [0, 32], sizes = [16, 32], strides = [1, 1]} : vector<16x96xf32> to vector<16x32xf32>
    %96 = vector.extract_strided_slice %93 {offsets = [0, 64], sizes = [16, 32], strides = [1, 1]} : vector<16x96xf32> to vector<16x32xf32>
    %97 = vector.extract_strided_slice %87 {offsets = [0, 96], sizes = [16, 32], strides = [1, 1]} : vector<16x128xf32> to vector<16x32xf32>
    %98 = math.tanh %97 : vector<16x32xf32>
    %99 = arith.mulf %95, %79 : vector<16x32xf32>
    %100 = arith.mulf %94, %98 : vector<16x32xf32>
    %101 = arith.addf %99, %100 : vector<16x32xf32>
    %102 = math.tanh %101 : vector<16x32xf32>
    %103 = arith.mulf %96, %102 : vector<16x32xf32>
    %104 = arith.truncf %103 : vector<16x32xf32> to vector<16x32xbf16>
    %c48 = arith.constant 48 : index
    %c0_29 = arith.constant 0 : index
    %105 = vector.load %arg10[%c48, %c0_29] : memref<128x32xbf16, #tpu.memory_space<vmem>>, vector<16x32xbf16>
    tpu.vector_store %arg10[%c48, %c0_29], %104 {strides = array<i32>} : memref<128x32xbf16, #tpu.memory_space<vmem>>, vector<16x32xbf16>,
    %106 = vector.extract_strided_slice %13 {offsets = [64, 0], sizes = [16, 128], strides = [1, 1]} : vector<128x128xf32> to vector<16x128xf32>
    %107 = arith.truncf %103 : vector<16x32xf32> to vector<16x32xbf16>
    %cst_30 = arith.constant dense<0.000000e+00> : vector<16x128xf32>
    %108 = tpu.matmul %107, %8, %cst_30 {dimension_numbers = #tpu.dot_dimension_numbers<[1], [0], [0], [1], [0, 0, 1, 1], [], []>} : vector<16x32xbf16>, vector<32x128xbf16>, vector<16x128xf32> -> vector<16x128xf32>
    %109 = arith.addf %106, %108 : vector<16x128xf32>
    %110 = vector.extract_strided_slice %109 {offsets = [0, 0], sizes = [16, 96], strides = [1, 1]} : vector<16x128xf32> to vector<16x96xf32>
    %111 = arith.negf %110 : vector<16x96xf32>
    %112 = math.exp %111 : vector<16x96xf32>
    %cst_31 = arith.constant 1.000000e+00 : f32
    %113 = vector.broadcast %cst_31 : f32 to vector<16x96xf32>
    %114 = arith.addf %113, %112 : vector<16x96xf32>
    %115 = arith.divf %113, %114 : vector<16x96xf32>
    %116 = vector.extract_strided_slice %115 {offsets = [0, 0], sizes = [16, 32], strides = [1, 1]} : vector<16x96xf32> to vector<16x32xf32>
    %117 = vector.extract_strided_slice %115 {offsets = [0, 32], sizes = [16, 32], strides = [1, 1]} : vector<16x96xf32> to vector<16x32xf32>
    %118 = vector.extract_strided_slice %115 {offsets = [0, 64], sizes = [16, 32], strides = [1, 1]} : vector<16x96xf32> to vector<16x32xf32>
    %119 = vector.extract_strided_slice %109 {offsets = [0, 96], sizes = [16, 32], strides = [1, 1]} : vector<16x128xf32> to vector<16x32xf32>
    %120 = math.tanh %119 : vector<16x32xf32>
    %121 = arith.mulf %117, %101 : vector<16x32xf32>
    %122 = arith.mulf %116, %120 : vector<16x32xf32>
    %123 = arith.addf %121, %122 : vector<16x32xf32>
    %124 = math.tanh %123 : vector<16x32xf32>
    %125 = arith.mulf %118, %124 : vector<16x32xf32>
    %126 = arith.truncf %125 : vector<16x32xf32> to vector<16x32xbf16>
    %c64 = arith.constant 64 : index
    %c0_32 = arith.constant 0 : index
    %127 = vector.load %arg10[%c64, %c0_32] : memref<128x32xbf16, #tpu.memory_space<vmem>>, vector<16x32xbf16>
    tpu.vector_store %arg10[%c64, %c0_32], %126 {strides = array<i32>} : memref<128x32xbf16, #tpu.memory_space<vmem>>, vector<16x32xbf16>,
    %128 = vector.extract_strided_slice %13 {offsets = [80, 0], sizes = [16, 128], strides = [1, 1]} : vector<128x128xf32> to vector<16x128xf32>
    %129 = arith.truncf %125 : vector<16x32xf32> to vector<16x32xbf16>
    %cst_33 = arith.constant dense<0.000000e+00> : vector<16x128xf32>
    %130 = tpu.matmul %129, %8, %cst_33 {dimension_numbers = #tpu.dot_dimension_numbers<[1], [0], [0], [1], [0, 0, 1, 1], [], []>} : vector<16x32xbf16>, vector<32x128xbf16>, vector<16x128xf32> -> vector<16x128xf32>
    %131 = arith.addf %128, %130 : vector<16x128xf32>
    %132 = vector.extract_strided_slice %131 {offsets = [0, 0], sizes = [16, 96], strides = [1, 1]} : vector<16x128xf32> to vector<16x96xf32>
    %133 = arith.negf %132 : vector<16x96xf32>
    %134 = math.exp %133 : vector<16x96xf32>
    %cst_34 = arith.constant 1.000000e+00 : f32
    %135 = vector.broadcast %cst_34 : f32 to vector<16x96xf32>
    %136 = arith.addf %135, %134 : vector<16x96xf32>
    %137 = arith.divf %135, %136 : vector<16x96xf32>
    %138 = vector.extract_strided_slice %137 {offsets = [0, 0], sizes = [16, 32], strides = [1, 1]} : vector<16x96xf32> to vector<16x32xf32>
    %139 = vector.extract_strided_slice %137 {offsets = [0, 32], sizes = [16, 32], strides = [1, 1]} : vector<16x96xf32> to vector<16x32xf32>
    %140 = vector.extract_strided_slice %137 {offsets = [0, 64], sizes = [16, 32], strides = [1, 1]} : vector<16x96xf32> to vector<16x32xf32>
    %141 = vector.extract_strided_slice %131 {offsets = [0, 96], sizes = [16, 32], strides = [1, 1]} : vector<16x128xf32> to vector<16x32xf32>
    %142 = math.tanh %141 : vector<16x32xf32>
    %143 = arith.mulf %139, %123 : vector<16x32xf32>
    %144 = arith.mulf %138, %142 : vector<16x32xf32>
    %145 = arith.addf %143, %144 : vector<16x32xf32>
    %146 = math.tanh %145 : vector<16x32xf32>
    %147 = arith.mulf %140, %146 : vector<16x32xf32>
    %148 = arith.truncf %147 : vector<16x32xf32> to vector<16x32xbf16>
    %c80 = arith.constant 80 : index
    %c0_35 = arith.constant 0 : index
    %149 = vector.load %arg10[%c80, %c0_35] : memref<128x32xbf16, #tpu.memory_space<vmem>>, vector<16x32xbf16>
    tpu.vector_store %arg10[%c80, %c0_35], %148 {strides = array<i32>} : memref<128x32xbf16, #tpu.memory_space<vmem>>, vector<16x32xbf16>,
    %150 = vector.extract_strided_slice %13 {offsets = [96, 0], sizes = [16, 128], strides = [1, 1]} : vector<128x128xf32> to vector<16x128xf32>
    %151 = arith.truncf %147 : vector<16x32xf32> to vector<16x32xbf16>
    %cst_36 = arith.constant dense<0.000000e+00> : vector<16x128xf32>
    %152 = tpu.matmul %151, %8, %cst_36 {dimension_numbers = #tpu.dot_dimension_numbers<[1], [0], [0], [1], [0, 0, 1, 1], [], []>} : vector<16x32xbf16>, vector<32x128xbf16>, vector<16x128xf32> -> vector<16x128xf32>
    %153 = arith.addf %150, %152 : vector<16x128xf32>
    %154 = vector.extract_strided_slice %153 {offsets = [0, 0], sizes = [16, 96], strides = [1, 1]} : vector<16x128xf32> to vector<16x96xf32>
    %155 = arith.negf %154 : vector<16x96xf32>
    %156 = math.exp %155 : vector<16x96xf32>
    %cst_37 = arith.constant 1.000000e+00 : f32
    %157 = vector.broadcast %cst_37 : f32 to vector<16x96xf32>
    %158 = arith.addf %157, %156 : vector<16x96xf32>
    %159 = arith.divf %157, %158 : vector<16x96xf32>
    %160 = vector.extract_strided_slice %159 {offsets = [0, 0], sizes = [16, 32], strides = [1, 1]} : vector<16x96xf32> to vector<16x32xf32>
    %161 = vector.extract_strided_slice %159 {offsets = [0, 32], sizes = [16, 32], strides = [1, 1]} : vector<16x96xf32> to vector<16x32xf32>
    %162 = vector.extract_strided_slice %159 {offsets = [0, 64], sizes = [16, 32], strides = [1, 1]} : vector<16x96xf32> to vector<16x32xf32>
    %163 = vector.extract_strided_slice %153 {offsets = [0, 96], sizes = [16, 32], strides = [1, 1]} : vector<16x128xf32> to vector<16x32xf32>
    %164 = math.tanh %163 : vector<16x32xf32>
    %165 = arith.mulf %161, %145 : vector<16x32xf32>
    %166 = arith.mulf %160, %164 : vector<16x32xf32>
    %167 = arith.addf %165, %166 : vector<16x32xf32>
    %168 = math.tanh %167 : vector<16x32xf32>
    %169 = arith.mulf %162, %168 : vector<16x32xf32>
    %170 = arith.truncf %169 : vector<16x32xf32> to vector<16x32xbf16>
    %c96 = arith.constant 96 : index
    %c0_38 = arith.constant 0 : index
    %171 = vector.load %arg10[%c96, %c0_38] : memref<128x32xbf16, #tpu.memory_space<vmem>>, vector<16x32xbf16>
    tpu.vector_store %arg10[%c96, %c0_38], %170 {strides = array<i32>} : memref<128x32xbf16, #tpu.memory_space<vmem>>, vector<16x32xbf16>,
    %172 = vector.extract_strided_slice %13 {offsets = [112, 0], sizes = [16, 128], strides = [1, 1]} : vector<128x128xf32> to vector<16x128xf32>
    %173 = arith.truncf %169 : vector<16x32xf32> to vector<16x32xbf16>
    %cst_39 = arith.constant dense<0.000000e+00> : vector<16x128xf32>
    %174 = tpu.matmul %173, %8, %cst_39 {dimension_numbers = #tpu.dot_dimension_numbers<[1], [0], [0], [1], [0, 0, 1, 1], [], []>} : vector<16x32xbf16>, vector<32x128xbf16>, vector<16x128xf32> -> vector<16x128xf32>
    %175 = arith.addf %172, %174 : vector<16x128xf32>
    %176 = vector.extract_strided_slice %175 {offsets = [0, 0], sizes = [16, 96], strides = [1, 1]} : vector<16x128xf32> to vector<16x96xf32>
    %177 = arith.negf %176 : vector<16x96xf32>
    %178 = math.exp %177 : vector<16x96xf32>
    %cst_40 = arith.constant 1.000000e+00 : f32
    %179 = vector.broadcast %cst_40 : f32 to vector<16x96xf32>
    %180 = arith.addf %179, %178 : vector<16x96xf32>
    %181 = arith.divf %179, %180 : vector<16x96xf32>
    %182 = vector.extract_strided_slice %181 {offsets = [0, 0], sizes = [16, 32], strides = [1, 1]} : vector<16x96xf32> to vector<16x32xf32>
    %183 = vector.extract_strided_slice %181 {offsets = [0, 32], sizes = [16, 32], strides = [1, 1]} : vector<16x96xf32> to vector<16x32xf32>
    %184 = vector.extract_strided_slice %181 {offsets = [0, 64], sizes = [16, 32], strides = [1, 1]} : vector<16x96xf32> to vector<16x32xf32>
    %185 = vector.extract_strided_slice %175 {offsets = [0, 96], sizes = [16, 32], strides = [1, 1]} : vector<16x128xf32> to vector<16x32xf32>
    %186 = math.tanh %185 : vector<16x32xf32>
    %187 = arith.mulf %183, %167 : vector<16x32xf32>
    %188 = arith.mulf %182, %186 : vector<16x32xf32>
    %189 = arith.addf %187, %188 : vector<16x32xf32>
    %190 = math.tanh %189 : vector<16x32xf32>
    %191 = arith.mulf %184, %190 : vector<16x32xf32>
    %192 = arith.truncf %191 : vector<16x32xf32> to vector<16x32xbf16>
    %c112 = arith.constant 112 : index
    %c0_41 = arith.constant 0 : index
    %193 = vector.load %arg10[%c112, %c0_41] : memref<128x32xbf16, #tpu.memory_space<vmem>>, vector<16x32xbf16>
    tpu.vector_store %arg10[%c112, %c0_41], %192 {strides = array<i32>} : memref<128x32xbf16, #tpu.memory_space<vmem>>, vector<16x32xbf16>,
    %c0_42 = arith.constant 0 : index
    %c0_43 = arith.constant 0 : index
    %c0_44 = arith.constant 0 : index
    %194 = vector.load %arg8[%c0_42, %c0_43, %c0_44] : memref<2x16x32xf32, #tpu.memory_space<vmem>>, vector<1x16x32xf32>
    %195 = vector.shape_cast %194 : vector<1x16x32xf32> to vector<16x32xf32>
    %196 = vector.shape_cast %191 : vector<16x32xf32> to vector<1x16x32xf32>
    tpu.vector_store %arg8[%c0_42, %c0_43, %c0_44], %196 {strides = array<i32>} : memref<2x16x32xf32, #tpu.memory_space<vmem>>, vector<1x16x32xf32>,
    %c0_45 = arith.constant 0 : index
    %c0_46 = arith.constant 0 : index
    %c0_47 = arith.constant 0 : index
    %197 = vector.load %arg9[%c0_45, %c0_46, %c0_47] : memref<2x16x32xf32, #tpu.memory_space<vmem>>, vector<1x16x32xf32>
    %198 = vector.shape_cast %197 : vector<1x16x32xf32> to vector<16x32xf32>
    %199 = vector.shape_cast %189 : vector<16x32xf32> to vector<1x16x32xf32>
    tpu.vector_store %arg9[%c0_45, %c0_46, %c0_47], %199 {strides = array<i32>} : memref<2x16x32xf32, #tpu.memory_space<vmem>>, vector<1x16x32xf32>,
    %c0_48 = arith.constant 0 : index
    %c0_49 = arith.constant 0 : index
    %200 = vector.load %arg10[%c0_48, %c0_49] : memref<128x32xbf16, #tpu.memory_space<vmem>>, vector<128x32xbf16>
    %c1 = arith.constant 1 : index
    %c0_50 = arith.constant 0 : index
    %c0_51 = arith.constant 0 : index
    %201 = vector.load %arg2[%c1, %c0_50, %c0_51] : memref<2x32x128xbf16, #tpu.memory_space<vmem>>, vector<1x32x128xbf16>
    %202 = vector.shape_cast %201 : vector<1x32x128xbf16> to vector<32x128xbf16>
    %c1_52 = arith.constant 1 : index
    %c0_53 = arith.constant 0 : index
    %c0_54 = arith.constant 0 : index
    %203 = vector.load %arg3[%c1_52, %c0_53, %c0_54] : memref<2x32x128xbf16, #tpu.memory_space<vmem>>, vector<1x32x128xbf16>
    %204 = vector.shape_cast %203 : vector<1x32x128xbf16> to vector<32x128xbf16>
    %c1_55 = arith.constant 1 : index
    %c0_56 = arith.constant 0 : index
    %c0_57 = arith.constant 0 : index
    %205 = vector.load %arg4[%c1_55, %c0_56, %c0_57] : memref<2x1x128xf32, #tpu.memory_space<vmem>>, vector<1x1x128xf32>
    %206 = vector.shape_cast %205 : vector<1x1x128xf32> to vector<1x128xf32>
    %cst_58 = arith.constant dense<0.000000e+00> : vector<128x128xf32>
    %207 = tpu.matmul %200, %202, %cst_58 {dimension_numbers = #tpu.dot_dimension_numbers<[1], [0], [0], [1], [0, 0, 1, 1], [], []>} : vector<128x32xbf16>, vector<32x128xbf16>, vector<128x128xf32> -> vector<128x128xf32>
    %208 = vector.broadcast %206 : vector<1x128xf32> to vector<128x128xf32>
    %209 = arith.addf %207, %208 : vector<128x128xf32>
    %c1_59 = arith.constant 1 : index
    %c0_60 = arith.constant 0 : index
    %c0_61 = arith.constant 0 : index
    %210 = vector.load %arg8[%c1_59, %c0_60, %c0_61] : memref<2x16x32xf32, #tpu.memory_space<vmem>>, vector<1x16x32xf32>
    %211 = vector.shape_cast %210 : vector<1x16x32xf32> to vector<16x32xf32>
    %c1_62 = arith.constant 1 : index
    %c0_63 = arith.constant 0 : index
    %c0_64 = arith.constant 0 : index
    %212 = vector.load %arg9[%c1_62, %c0_63, %c0_64] : memref<2x16x32xf32, #tpu.memory_space<vmem>>, vector<1x16x32xf32>
    %213 = vector.shape_cast %212 : vector<1x16x32xf32> to vector<16x32xf32>
    %214 = vector.extract_strided_slice %209 {offsets = [0, 0], sizes = [16, 128], strides = [1, 1]} : vector<128x128xf32> to vector<16x128xf32>
    %215 = arith.truncf %211 : vector<16x32xf32> to vector<16x32xbf16>
    %cst_65 = arith.constant dense<0.000000e+00> : vector<16x128xf32>
    %216 = tpu.matmul %215, %204, %cst_65 {dimension_numbers = #tpu.dot_dimension_numbers<[1], [0], [0], [1], [0, 0, 1, 1], [], []>} : vector<16x32xbf16>, vector<32x128xbf16>, vector<16x128xf32> -> vector<16x128xf32>
    %217 = arith.addf %214, %216 : vector<16x128xf32>
    %218 = vector.extract_strided_slice %217 {offsets = [0, 0], sizes = [16, 96], strides = [1, 1]} : vector<16x128xf32> to vector<16x96xf32>
    %219 = arith.negf %218 : vector<16x96xf32>
    %220 = math.exp %219 : vector<16x96xf32>
    %cst_66 = arith.constant 1.000000e+00 : f32
    %221 = vector.broadcast %cst_66 : f32 to vector<16x96xf32>
    %222 = arith.addf %221, %220 : vector<16x96xf32>
    %223 = arith.divf %221, %222 : vector<16x96xf32>
    %224 = vector.extract_strided_slice %223 {offsets = [0, 0], sizes = [16, 32], strides = [1, 1]} : vector<16x96xf32> to vector<16x32xf32>
    %225 = vector.extract_strided_slice %223 {offsets = [0, 32], sizes = [16, 32], strides = [1, 1]} : vector<16x96xf32> to vector<16x32xf32>
    %226 = vector.extract_strided_slice %223 {offsets = [0, 64], sizes = [16, 32], strides = [1, 1]} : vector<16x96xf32> to vector<16x32xf32>
    %227 = vector.extract_strided_slice %217 {offsets = [0, 96], sizes = [16, 32], strides = [1, 1]} : vector<16x128xf32> to vector<16x32xf32>
    %228 = math.tanh %227 : vector<16x32xf32>
    %229 = arith.mulf %225, %213 : vector<16x32xf32>
    %230 = arith.mulf %224, %228 : vector<16x32xf32>
    %231 = arith.addf %229, %230 : vector<16x32xf32>
    %232 = math.tanh %231 : vector<16x32xf32>
    %233 = arith.mulf %226, %232 : vector<16x32xf32>
    %234 = vector.extract_strided_slice %209 {offsets = [16, 0], sizes = [16, 128], strides = [1, 1]} : vector<128x128xf32> to vector<16x128xf32>
    %235 = arith.truncf %233 : vector<16x32xf32> to vector<16x32xbf16>
    %cst_67 = arith.constant dense<0.000000e+00> : vector<16x128xf32>
    %236 = tpu.matmul %235, %204, %cst_67 {dimension_numbers = #tpu.dot_dimension_numbers<[1], [0], [0], [1], [0, 0, 1, 1], [], []>} : vector<16x32xbf16>, vector<32x128xbf16>, vector<16x128xf32> -> vector<16x128xf32>
    %237 = arith.addf %234, %236 : vector<16x128xf32>
    %238 = vector.extract_strided_slice %237 {offsets = [0, 0], sizes = [16, 96], strides = [1, 1]} : vector<16x128xf32> to vector<16x96xf32>
    %239 = arith.negf %238 : vector<16x96xf32>
    %240 = math.exp %239 : vector<16x96xf32>
    %cst_68 = arith.constant 1.000000e+00 : f32
    %241 = vector.broadcast %cst_68 : f32 to vector<16x96xf32>
    %242 = arith.addf %241, %240 : vector<16x96xf32>
    %243 = arith.divf %241, %242 : vector<16x96xf32>
    %244 = vector.extract_strided_slice %243 {offsets = [0, 0], sizes = [16, 32], strides = [1, 1]} : vector<16x96xf32> to vector<16x32xf32>
    %245 = vector.extract_strided_slice %243 {offsets = [0, 32], sizes = [16, 32], strides = [1, 1]} : vector<16x96xf32> to vector<16x32xf32>
    %246 = vector.extract_strided_slice %243 {offsets = [0, 64], sizes = [16, 32], strides = [1, 1]} : vector<16x96xf32> to vector<16x32xf32>
    %247 = vector.extract_strided_slice %237 {offsets = [0, 96], sizes = [16, 32], strides = [1, 1]} : vector<16x128xf32> to vector<16x32xf32>
    %248 = math.tanh %247 : vector<16x32xf32>
    %249 = arith.mulf %245, %231 : vector<16x32xf32>
    %250 = arith.mulf %244, %248 : vector<16x32xf32>
    %251 = arith.addf %249, %250 : vector<16x32xf32>
    %252 = math.tanh %251 : vector<16x32xf32>
    %253 = arith.mulf %246, %252 : vector<16x32xf32>
    %254 = vector.extract_strided_slice %209 {offsets = [32, 0], sizes = [16, 128], strides = [1, 1]} : vector<128x128xf32> to vector<16x128xf32>
    %255 = arith.truncf %253 : vector<16x32xf32> to vector<16x32xbf16>
    %cst_69 = arith.constant dense<0.000000e+00> : vector<16x128xf32>
    %256 = tpu.matmul %255, %204, %cst_69 {dimension_numbers = #tpu.dot_dimension_numbers<[1], [0], [0], [1], [0, 0, 1, 1], [], []>} : vector<16x32xbf16>, vector<32x128xbf16>, vector<16x128xf32> -> vector<16x128xf32>
    %257 = arith.addf %254, %256 : vector<16x128xf32>
    %258 = vector.extract_strided_slice %257 {offsets = [0, 0], sizes = [16, 96], strides = [1, 1]} : vector<16x128xf32> to vector<16x96xf32>
    %259 = arith.negf %258 : vector<16x96xf32>
    %260 = math.exp %259 : vector<16x96xf32>
    %cst_70 = arith.constant 1.000000e+00 : f32
    %261 = vector.broadcast %cst_70 : f32 to vector<16x96xf32>
    %262 = arith.addf %261, %260 : vector<16x96xf32>
    %263 = arith.divf %261, %262 : vector<16x96xf32>
    %264 = vector.extract_strided_slice %263 {offsets = [0, 0], sizes = [16, 32], strides = [1, 1]} : vector<16x96xf32> to vector<16x32xf32>
    %265 = vector.extract_strided_slice %263 {offsets = [0, 32], sizes = [16, 32], strides = [1, 1]} : vector<16x96xf32> to vector<16x32xf32>
    %266 = vector.extract_strided_slice %263 {offsets = [0, 64], sizes = [16, 32], strides = [1, 1]} : vector<16x96xf32> to vector<16x32xf32>
    %267 = vector.extract_strided_slice %257 {offsets = [0, 96], sizes = [16, 32], strides = [1, 1]} : vector<16x128xf32> to vector<16x32xf32>
    %268 = math.tanh %267 : vector<16x32xf32>
    %269 = arith.mulf %265, %251 : vector<16x32xf32>
    %270 = arith.mulf %264, %268 : vector<16x32xf32>
    %271 = arith.addf %269, %270 : vector<16x32xf32>
    %272 = math.tanh %271 : vector<16x32xf32>
    %273 = arith.mulf %266, %272 : vector<16x32xf32>
    %274 = vector.extract_strided_slice %209 {offsets = [48, 0], sizes = [16, 128], strides = [1, 1]} : vector<128x128xf32> to vector<16x128xf32>
    %275 = arith.truncf %273 : vector<16x32xf32> to vector<16x32xbf16>
    %cst_71 = arith.constant dense<0.000000e+00> : vector<16x128xf32>
    %276 = tpu.matmul %275, %204, %cst_71 {dimension_numbers = #tpu.dot_dimension_numbers<[1], [0], [0], [1], [0, 0, 1, 1], [], []>} : vector<16x32xbf16>, vector<32x128xbf16>, vector<16x128xf32> -> vector<16x128xf32>
    %277 = arith.addf %274, %276 : vector<16x128xf32>
    %278 = vector.extract_strided_slice %277 {offsets = [0, 0], sizes = [16, 96], strides = [1, 1]} : vector<16x128xf32> to vector<16x96xf32>
    %279 = arith.negf %278 : vector<16x96xf32>
    %280 = math.exp %279 : vector<16x96xf32>
    %cst_72 = arith.constant 1.000000e+00 : f32
    %281 = vector.broadcast %cst_72 : f32 to vector<16x96xf32>
    %282 = arith.addf %281, %280 : vector<16x96xf32>
    %283 = arith.divf %281, %282 : vector<16x96xf32>
    %284 = vector.extract_strided_slice %283 {offsets = [0, 0], sizes = [16, 32], strides = [1, 1]} : vector<16x96xf32> to vector<16x32xf32>
    %285 = vector.extract_strided_slice %283 {offsets = [0, 32], sizes = [16, 32], strides = [1, 1]} : vector<16x96xf32> to vector<16x32xf32>
    %286 = vector.extract_strided_slice %283 {offsets = [0, 64], sizes = [16, 32], strides = [1, 1]} : vector<16x96xf32> to vector<16x32xf32>
    %287 = vector.extract_strided_slice %277 {offsets = [0, 96], sizes = [16, 32], strides = [1, 1]} : vector<16x128xf32> to vector<16x32xf32>
    %288 = math.tanh %287 : vector<16x32xf32>
    %289 = arith.mulf %285, %271 : vector<16x32xf32>
    %290 = arith.mulf %284, %288 : vector<16x32xf32>
    %291 = arith.addf %289, %290 : vector<16x32xf32>
    %292 = math.tanh %291 : vector<16x32xf32>
    %293 = arith.mulf %286, %292 : vector<16x32xf32>
    %294 = vector.extract_strided_slice %209 {offsets = [64, 0], sizes = [16, 128], strides = [1, 1]} : vector<128x128xf32> to vector<16x128xf32>
    %295 = arith.truncf %293 : vector<16x32xf32> to vector<16x32xbf16>
    %cst_73 = arith.constant dense<0.000000e+00> : vector<16x128xf32>
    %296 = tpu.matmul %295, %204, %cst_73 {dimension_numbers = #tpu.dot_dimension_numbers<[1], [0], [0], [1], [0, 0, 1, 1], [], []>} : vector<16x32xbf16>, vector<32x128xbf16>, vector<16x128xf32> -> vector<16x128xf32>
    %297 = arith.addf %294, %296 : vector<16x128xf32>
    %298 = vector.extract_strided_slice %297 {offsets = [0, 0], sizes = [16, 96], strides = [1, 1]} : vector<16x128xf32> to vector<16x96xf32>
    %299 = arith.negf %298 : vector<16x96xf32>
    %300 = math.exp %299 : vector<16x96xf32>
    %cst_74 = arith.constant 1.000000e+00 : f32
    %301 = vector.broadcast %cst_74 : f32 to vector<16x96xf32>
    %302 = arith.addf %301, %300 : vector<16x96xf32>
    %303 = arith.divf %301, %302 : vector<16x96xf32>
    %304 = vector.extract_strided_slice %303 {offsets = [0, 0], sizes = [16, 32], strides = [1, 1]} : vector<16x96xf32> to vector<16x32xf32>
    %305 = vector.extract_strided_slice %303 {offsets = [0, 32], sizes = [16, 32], strides = [1, 1]} : vector<16x96xf32> to vector<16x32xf32>
    %306 = vector.extract_strided_slice %303 {offsets = [0, 64], sizes = [16, 32], strides = [1, 1]} : vector<16x96xf32> to vector<16x32xf32>
    %307 = vector.extract_strided_slice %297 {offsets = [0, 96], sizes = [16, 32], strides = [1, 1]} : vector<16x128xf32> to vector<16x32xf32>
    %308 = math.tanh %307 : vector<16x32xf32>
    %309 = arith.mulf %305, %291 : vector<16x32xf32>
    %310 = arith.mulf %304, %308 : vector<16x32xf32>
    %311 = arith.addf %309, %310 : vector<16x32xf32>
    %312 = math.tanh %311 : vector<16x32xf32>
    %313 = arith.mulf %306, %312 : vector<16x32xf32>
    %314 = vector.extract_strided_slice %209 {offsets = [80, 0], sizes = [16, 128], strides = [1, 1]} : vector<128x128xf32> to vector<16x128xf32>
    %315 = arith.truncf %313 : vector<16x32xf32> to vector<16x32xbf16>
    %cst_75 = arith.constant dense<0.000000e+00> : vector<16x128xf32>
    %316 = tpu.matmul %315, %204, %cst_75 {dimension_numbers = #tpu.dot_dimension_numbers<[1], [0], [0], [1], [0, 0, 1, 1], [], []>} : vector<16x32xbf16>, vector<32x128xbf16>, vector<16x128xf32> -> vector<16x128xf32>
    %317 = arith.addf %314, %316 : vector<16x128xf32>
    %318 = vector.extract_strided_slice %317 {offsets = [0, 0], sizes = [16, 96], strides = [1, 1]} : vector<16x128xf32> to vector<16x96xf32>
    %319 = arith.negf %318 : vector<16x96xf32>
    %320 = math.exp %319 : vector<16x96xf32>
    %cst_76 = arith.constant 1.000000e+00 : f32
    %321 = vector.broadcast %cst_76 : f32 to vector<16x96xf32>
    %322 = arith.addf %321, %320 : vector<16x96xf32>
    %323 = arith.divf %321, %322 : vector<16x96xf32>
    %324 = vector.extract_strided_slice %323 {offsets = [0, 0], sizes = [16, 32], strides = [1, 1]} : vector<16x96xf32> to vector<16x32xf32>
    %325 = vector.extract_strided_slice %323 {offsets = [0, 32], sizes = [16, 32], strides = [1, 1]} : vector<16x96xf32> to vector<16x32xf32>
    %326 = vector.extract_strided_slice %323 {offsets = [0, 64], sizes = [16, 32], strides = [1, 1]} : vector<16x96xf32> to vector<16x32xf32>
    %327 = vector.extract_strided_slice %317 {offsets = [0, 96], sizes = [16, 32], strides = [1, 1]} : vector<16x128xf32> to vector<16x32xf32>
    %328 = math.tanh %327 : vector<16x32xf32>
    %329 = arith.mulf %325, %311 : vector<16x32xf32>
    %330 = arith.mulf %324, %328 : vector<16x32xf32>
    %331 = arith.addf %329, %330 : vector<16x32xf32>
    %332 = math.tanh %331 : vector<16x32xf32>
    %333 = arith.mulf %326, %332 : vector<16x32xf32>
    %334 = vector.extract_strided_slice %209 {offsets = [96, 0], sizes = [16, 128], strides = [1, 1]} : vector<128x128xf32> to vector<16x128xf32>
    %335 = arith.truncf %333 : vector<16x32xf32> to vector<16x32xbf16>
    %cst_77 = arith.constant dense<0.000000e+00> : vector<16x128xf32>
    %336 = tpu.matmul %335, %204, %cst_77 {dimension_numbers = #tpu.dot_dimension_numbers<[1], [0], [0], [1], [0, 0, 1, 1], [], []>} : vector<16x32xbf16>, vector<32x128xbf16>, vector<16x128xf32> -> vector<16x128xf32>
    %337 = arith.addf %334, %336 : vector<16x128xf32>
    %338 = vector.extract_strided_slice %337 {offsets = [0, 0], sizes = [16, 96], strides = [1, 1]} : vector<16x128xf32> to vector<16x96xf32>
    %339 = arith.negf %338 : vector<16x96xf32>
    %340 = math.exp %339 : vector<16x96xf32>
    %cst_78 = arith.constant 1.000000e+00 : f32
    %341 = vector.broadcast %cst_78 : f32 to vector<16x96xf32>
    %342 = arith.addf %341, %340 : vector<16x96xf32>
    %343 = arith.divf %341, %342 : vector<16x96xf32>
    %344 = vector.extract_strided_slice %343 {offsets = [0, 0], sizes = [16, 32], strides = [1, 1]} : vector<16x96xf32> to vector<16x32xf32>
    %345 = vector.extract_strided_slice %343 {offsets = [0, 32], sizes = [16, 32], strides = [1, 1]} : vector<16x96xf32> to vector<16x32xf32>
    %346 = vector.extract_strided_slice %343 {offsets = [0, 64], sizes = [16, 32], strides = [1, 1]} : vector<16x96xf32> to vector<16x32xf32>
    %347 = vector.extract_strided_slice %337 {offsets = [0, 96], sizes = [16, 32], strides = [1, 1]} : vector<16x128xf32> to vector<16x32xf32>
    %348 = math.tanh %347 : vector<16x32xf32>
    %349 = arith.mulf %345, %331 : vector<16x32xf32>
    %350 = arith.mulf %344, %348 : vector<16x32xf32>
    %351 = arith.addf %349, %350 : vector<16x32xf32>
    %352 = math.tanh %351 : vector<16x32xf32>
    %353 = arith.mulf %346, %352 : vector<16x32xf32>
    %354 = vector.extract_strided_slice %209 {offsets = [112, 0], sizes = [16, 128], strides = [1, 1]} : vector<128x128xf32> to vector<16x128xf32>
    %355 = arith.truncf %353 : vector<16x32xf32> to vector<16x32xbf16>
    %cst_79 = arith.constant dense<0.000000e+00> : vector<16x128xf32>
    %356 = tpu.matmul %355, %204, %cst_79 {dimension_numbers = #tpu.dot_dimension_numbers<[1], [0], [0], [1], [0, 0, 1, 1], [], []>} : vector<16x32xbf16>, vector<32x128xbf16>, vector<16x128xf32> -> vector<16x128xf32>
    %357 = arith.addf %354, %356 : vector<16x128xf32>
    %358 = vector.extract_strided_slice %357 {offsets = [0, 0], sizes = [16, 96], strides = [1, 1]} : vector<16x128xf32> to vector<16x96xf32>
    %359 = arith.negf %358 : vector<16x96xf32>
    %360 = math.exp %359 : vector<16x96xf32>
    %cst_80 = arith.constant 1.000000e+00 : f32
    %361 = vector.broadcast %cst_80 : f32 to vector<16x96xf32>
    %362 = arith.addf %361, %360 : vector<16x96xf32>
    %363 = arith.divf %361, %362 : vector<16x96xf32>
    %364 = vector.extract_strided_slice %363 {offsets = [0, 0], sizes = [16, 32], strides = [1, 1]} : vector<16x96xf32> to vector<16x32xf32>
    %365 = vector.extract_strided_slice %363 {offsets = [0, 32], sizes = [16, 32], strides = [1, 1]} : vector<16x96xf32> to vector<16x32xf32>
    %366 = vector.extract_strided_slice %363 {offsets = [0, 64], sizes = [16, 32], strides = [1, 1]} : vector<16x96xf32> to vector<16x32xf32>
    %367 = vector.extract_strided_slice %357 {offsets = [0, 96], sizes = [16, 32], strides = [1, 1]} : vector<16x128xf32> to vector<16x32xf32>
    %368 = math.tanh %367 : vector<16x32xf32>
    %369 = arith.mulf %365, %351 : vector<16x32xf32>
    %370 = arith.mulf %364, %368 : vector<16x32xf32>
    %371 = arith.addf %369, %370 : vector<16x32xf32>
    %372 = math.tanh %371 : vector<16x32xf32>
    %373 = arith.mulf %366, %372 : vector<16x32xf32>
    %c1_81 = arith.constant 1 : index
    %c0_82 = arith.constant 0 : index
    %c0_83 = arith.constant 0 : index
    %374 = vector.load %arg8[%c1_81, %c0_82, %c0_83] : memref<2x16x32xf32, #tpu.memory_space<vmem>>, vector<1x16x32xf32>
    %375 = vector.shape_cast %374 : vector<1x16x32xf32> to vector<16x32xf32>
    %376 = vector.shape_cast %373 : vector<16x32xf32> to vector<1x16x32xf32>
    tpu.vector_store %arg8[%c1_81, %c0_82, %c0_83], %376 {strides = array<i32>} : memref<2x16x32xf32, #tpu.memory_space<vmem>>, vector<1x16x32xf32>,
    %c1_84 = arith.constant 1 : index
    %c0_85 = arith.constant 0 : index
    %c0_86 = arith.constant 0 : index
    %377 = vector.load %arg9[%c1_84, %c0_85, %c0_86] : memref<2x16x32xf32, #tpu.memory_space<vmem>>, vector<1x16x32xf32>
    %378 = vector.shape_cast %377 : vector<1x16x32xf32> to vector<16x32xf32>
    %379 = vector.shape_cast %371 : vector<16x32xf32> to vector<1x16x32xf32>
    tpu.vector_store %arg9[%c1_84, %c0_85, %c0_86], %379 {strides = array<i32>} : memref<2x16x32xf32, #tpu.memory_space<vmem>>, vector<1x16x32xf32>,
    %c0_i32_87 = arith.constant 0 : i32
    %380 = arith.cmpi eq, %arg0, %c0_i32_87 : i32
    %381 = arith.extui %380 : i1 to i32
    %c0_i32_88 = arith.constant 0 : i32
    %382 = arith.cmpi ne, %381, %c0_i32_88 : i32
    scf.if %382 {
      %383 = arith.truncf %373 : vector<16x32xf32> to vector<16x32xbf16>
      %c0_89 = arith.constant 0 : index
      %c0_90 = arith.constant 0 : index
      %384 = vector.load %arg5[%c0_89, %c0_90] : memref<32x128xbf16, #tpu.memory_space<vmem>>, vector<32x128xbf16>
      %cst_91 = arith.constant dense<0.000000e+00> : vector<16x128xf32>
      %385 = tpu.matmul %383, %384, %cst_91 {dimension_numbers = #tpu.dot_dimension_numbers<[1], [0], [0], [1], [0, 0, 1, 1], [], []>} : vector<16x32xbf16>, vector<32x128xbf16>, vector<16x128xf32> -> vector<16x128xf32>
      %c0_92 = arith.constant 0 : index
      %c0_93 = arith.constant 0 : index
      %386 = vector.load %arg6[%c0_92, %c0_93] : memref<1x128xf32, #tpu.memory_space<vmem>>, vector<1x128xf32>
      %387 = vector.broadcast %386 : vector<1x128xf32> to vector<16x128xf32>
      %388 = arith.addf %385, %387 : vector<16x128xf32>
      %c0_94 = arith.constant 0 : index
      %c0_95 = arith.constant 0 : index
      %389 = vector.load %arg7[%c0_94, %c0_95] : memref<16x128xf32, #tpu.memory_space<vmem>>, vector<16x128xf32>
      tpu.vector_store %arg7[%c0_94, %c0_95], %388 {strides = array<i32>} : memref<16x128xf32, #tpu.memory_space<vmem>>, vector<16x128xf32>,
    } else {
    }
    return
  }
  func.func @transform_0(%arg0: i32) -> (i32, i32) {
    %c0_i32 = arith.constant 0 : i32
    %c0_i32_0 = arith.constant 0 : i32
    return %arg0, %c0_i32 : i32, i32
  }
  func.func @transform_1(%arg0: i32) -> (i32, i32, i32) {
    %c0_i32 = arith.constant 0 : i32
    %c0_i32_0 = arith.constant 0 : i32
    %c0_i32_1 = arith.constant 0 : i32
    %c0_i32_2 = arith.constant 0 : i32
    return %c0_i32, %c0_i32_0, %c0_i32_1 : i32, i32, i32
  }
  func.func @transform_2(%arg0: i32) -> (i32, i32, i32) {
    %c0_i32 = arith.constant 0 : i32
    %c0_i32_0 = arith.constant 0 : i32
    %c0_i32_1 = arith.constant 0 : i32
    %c0_i32_2 = arith.constant 0 : i32
    return %c0_i32, %c0_i32_0, %c0_i32_1 : i32, i32, i32
  }
  func.func @transform_3(%arg0: i32) -> (i32, i32, i32) {
    %c0_i32 = arith.constant 0 : i32
    %c0_i32_0 = arith.constant 0 : i32
    %c0_i32_1 = arith.constant 0 : i32
    %c0_i32_2 = arith.constant 0 : i32
    return %c0_i32, %c0_i32_0, %c0_i32_1 : i32, i32, i32
  }
  func.func @transform_4(%arg0: i32) -> (i32, i32) {
    %c0_i32 = arith.constant 0 : i32
    %c0_i32_0 = arith.constant 0 : i32
    %c0_i32_1 = arith.constant 0 : i32
    return %c0_i32, %c0_i32_0 : i32, i32
  }
  func.func @transform_5(%arg0: i32) -> (i32, i32) {
    %c0_i32 = arith.constant 0 : i32
    %c0_i32_0 = arith.constant 0 : i32
    %c0_i32_1 = arith.constant 0 : i32
    return %c0_i32, %c0_i32_0 : i32, i32
  }
  func.func @transform_6(%arg0: i32) -> (i32, i32) {
    %c0_i32 = arith.constant 0 : i32
    %c0_i32_0 = arith.constant 0 : i32
    %c0_i32_1 = arith.constant 0 : i32
    return %c0_i32, %c0_i32_0 : i32, i32
  }
}

</mosaic_0001>

<llo_original>
// kernel: fwd.1
$region0: #{fwd.1}
  #allocation0 [shape = 'u32[]', space=smem, size = 0x4, offset = 0x4, fixed_abs, tag = 'smem constant byte address 0x4 - core index']
  #allocation1 [shape = 'u32[144,128]{1,0:T(1,128)}', space=vmem, size = 0x12000, scoped, tag = 'internal scratch']
  #allocation2 [shape = 'f32[2,16,32]{2,1,0:T(8,128)}', space=vmem, size = 0x4000, scoped, tag = 'scratch operand']
  #allocation3 [shape = 'f32[2,16,32]{2,1,0:T(8,128)}', space=vmem, size = 0x4000, scoped, tag = 'scratch operand']
  #allocation4 [shape = 'bf16[128,32]{1,0:T(16,128)(2,1)}', space=vmem, size = 0x8000, scoped, tag = 'scratch operand']
  %s0 = inlined_call_operand.vmem [shape: bf16[128,16], index: 0, kind: input, shape index: {}]
  %s1 = inlined_call_operand.vmem [shape: bf16[2,32,128], index: 1, kind: input, shape index: {}]
  %s2 = inlined_call_operand.vmem [shape: bf16[2,32,128], index: 2, kind: input, shape index: {}]
  %s3 = inlined_call_operand.vmem [shape: f32[2,1,128], index: 3, kind: input, shape index: {}]
  %s4 = inlined_call_operand.vmem [shape: bf16[32,128], index: 4, kind: input, shape index: {}]
  %s5 = inlined_call_operand.vmem [shape: f32[1,128], index: 5, kind: input, shape index: {}]
  %s6 = inlined_call_operand.vmem [shape: f32[16,128], index: 6, kind: output, shape index: {}]
  %s7 = sld [smem:[#allocation0]]
  $region42: #{fwd.1} parent=0
    _
  %s9 = ssub.s32 1, %s7
  %s10 = scalar_select 0, %s9, %s7
  // Predicated region
  $region2: #{fwd.1} parent=0 // pred_check
    _
  $region3: #{fwd.1} parent=0 // pred_check_branch
    %12 = sbr.rel (0) target = $region5
  $region4: #{fwd.1} parent=0 // pred_region
    _
  $region5: #{fwd.1} parent=0 // pred_fallthru
    _
  // Predicated region
  $region6: #{fwd.1} parent=0 // pred_check
    _
  $region7: #{fwd.1} parent=0 // pred_check_branch
    %14 = sbr.rel (0) target = $region9
  $region8: #{fwd.1} parent=0 // pred_region
    _
  $region9: #{fwd.1} parent=0 // pred_fallthru
    _
  // Predicated region
  $region10: #{fwd.1} parent=0 // pred_check
    _
  $region11: #{fwd.1} parent=0 // pred_check_branch
    %16 = sbr.rel (0) target = $region13
  $region12: #{fwd.1} parent=0 // pred_region
    _
  $region13: #{fwd.1} parent=0 // pred_fallthru
    _
  // Predicated region
  $region14: #{fwd.1} parent=0 // pred_check
    _
  $region15: #{fwd.1} parent=0 // pred_check_branch
    %18 = sbr.rel (0) target = $region17
  $region16: #{fwd.1} parent=0 // pred_region
    _
  $region17: #{fwd.1} parent=0 // pred_fallthru
    _
  // Predicated region
  $region18: #{fwd.1} parent=0 // pred_check
    _
  $region19: #{fwd.1} parent=0 // pred_check_branch
    %20 = sbr.rel (0) target = $region21
  $region20: #{fwd.1} parent=0 // pred_region
    _
  $region21: #{fwd.1} parent=0 // pred_fallthru
    _
  // Predicated region
  $region22: #{fwd.1} parent=0 // pred_check
    _
  $region23: #{fwd.1} parent=0 // pred_check_branch
    %22 = sbr.rel (0) target = $region25
  $region24: #{fwd.1} parent=0 // pred_region
    _
  $region25: #{fwd.1} parent=0 // pred_fallthru
    _
  %p24 = scmp.eq.s32.totalorder 0, 0
  // Predicated region
  $region26: #{fwd.1} parent=0 // pred_check
    %p25 = pneg %p24
  $region27: #{fwd.1} parent=0 // pred_check_branch
    %27 = sbr.rel (%p25) target = $region29
  $region28: #{fwd.1} parent=0 // pred_region
    %vm28 = vcmask 261120
    %29 = vst.msk [vmem:[#allocation2] sm:$0xff] %vm28, 0.0
    %30 = vst.msk [vmem:[#allocation2 + $0x8] sm:$0xff] %vm28, 0.0
    %31 = vst.msk [vmem:[#allocation2 + $0x10] sm:$0xff] %vm28, 0.0
    %32 = vst.msk [vmem:[#allocation2 + $0x18] sm:$0xff] %vm28, 0.0
    %33 = vst.msk [vmem:[#allocation3] sm:$0xff] %vm28, 0.0
    %34 = vst.msk [vmem:[#allocation3 + $0x8] sm:$0xff] %vm28, 0.0
    %35 = vst.msk [vmem:[#allocation3 + $0x10] sm:$0xff] %vm28, 0.0
    %36 = vst.msk [vmem:[#allocation3 + $0x18] sm:$0xff] %vm28, 0.0
  $region29: #{fwd.1} parent=0 // pred_fallthru
    _
  %v37 = vld [vmem:[%s0] sm:$0xf]
  %v38 = vld [vmem:[%s0 + $0x4] sm:$0xf]
  %v39 = vld [vmem:[%s0 + $0x8] sm:$0xf]
  %v40 = vld [vmem:[%s0 + $0xc] sm:$0xf]
  %v41 = vld [vmem:[%s0 + $0x10] sm:$0xf]
  %v42 = vld [vmem:[%s0 + $0x14] sm:$0xf]
  %v43 = vld [vmem:[%s0 + $0x18] sm:$0xf]
  %v44 = vld [vmem:[%s0 + $0x1c] sm:$0xf]
  %v45 = vld [vmem:[%s0 + $0x20] sm:$0xf]
  %v46 = vld [vmem:[%s0 + $0x24] sm:$0xf]
  %v47 = vld [vmem:[%s0 + $0x28] sm:$0xf]
  %v48 = vld [vmem:[%s0 + $0x2c] sm:$0xf]
  %v49 = vld [vmem:[%s0 + $0x30] sm:$0xf]
  %v50 = vld [vmem:[%s0 + $0x34] sm:$0xf]
  %v51 = vld [vmem:[%s0 + $0x38] sm:$0xf]
  %v52 = vld [vmem:[%s0 + $0x3c] sm:$0xf]
  %v53 = vld [vmem:[%s1] sm:$0xf]
  %v54 = vld [vmem:[%s1 + $0x4] sm:$0xf]
  %v55 = vld [vmem:[%s2] sm:$0xf]
  %v56 = vld [vmem:[%s2 + $0x4] sm:$0xf]
  %v57 = vld [vmem:[%s2 + $0x8] sm:$0xf]
  %v58 = vld [vmem:[%s2 + $0xc] sm:$0xf]
  %v59 = vld [vmem:[%s3] sm:$0x1]
  %v61 = vlaneseq
  %v62 = vshrl.u32 %v61, 7
  %v63 = vsub.s32 0, %v62
  %v64 = vrot.slane %v59, %v63
  %v82 = vunpack.c.l.b16 %v37
  %v83 = vunpack.c.l.b16 %v38
  %v84 = vunpack.c.l.b16 %v39
  %v85 = vunpack.c.l.b16 %v40
  %v86 = vunpack.c.l.b16 %v41
  %v87 = vunpack.c.l.b16 %v42
  %v88 = vunpack.c.l.b16 %v43
  %v89 = vunpack.c.l.b16 %v44
  %v90 = vunpack.c.l.b16 %v45
  %v91 = vunpack.c.l.b16 %v46
  %v92 = vunpack.c.l.b16 %v47
  %v93 = vunpack.c.l.b16 %v48
  %v94 = vunpack.c.l.b16 %v49
  %v95 = vunpack.c.l.b16 %v50
  %v96 = vunpack.c.l.b16 %v51
  %v97 = vunpack.c.l.b16 %v52
  %v98 = vpack.c.b16 %v83, %v82
  %v99 = vpack.c.b16 %v85, %v84
  %v100 = vpack.c.b16 %v87, %v86
  %v101 = vpack.c.b16 %v89, %v88
  %v102 = vpack.c.b16 %v91, %v90
  %v103 = vpack.c.b16 %v93, %v92
  %v104 = vpack.c.b16 %v95, %v94
  %v105 = vpack.c.b16 %v97, %v96
  %v108 = vunpack.c.l.b16 %v53
  %v109 = vunpack.c.l.b16 %v54
  %v110 = vpack.c.b16 %v109, %v108
  %vm112 = vcmask 130048
  %v114 = vsel %vm112, %v98, 0
  %v117 = vsel %vm112, %v99, 0
  %v120 = vsel %vm112, %v100, 0
  %v123 = vsel %vm112, %v101, 0
  %v126 = vsel %vm112, %v102, 0
  %v129 = vsel %vm112, %v103, 0
  %v132 = vsel %vm112, %v104, 0
  %v135 = vsel %vm112, %v105, 0
  %137 = vmatprep.subr.bf16.mxu0 0
  %138 = vmatpush1.bf16.msra.mxu0 %v110
  %139 = vmatprep.subr.bf16.mxu0 0
  %140 = vmatpush1.bf16.msra.mxu0 0
  %141 = vmatprep.subr.bf16.mxu0 0
  %142 = vmatpush1.bf16.msra.mxu0 0
  %143 = vmatprep.subr.bf16.mxu0 0
  %144 = vmatpush1.bf16.msra.mxu0 0
  %145 = vmatprep.subr.bf16.mxu0 0
  %146 = vmatpush1.bf16.msra.mxu0 0
  %147 = vmatprep.subr.bf16.mxu0 0
  %148 = vmatpush1.bf16.msra.mxu0 0
  %149 = vmatprep.subr.bf16.mxu0 0
  %150 = vmatpush1.bf16.msra.mxu0 0
  %151 = vmatprep.subr.bf16.mxu0 0
  %152 = vmatpush1.bf16.msra.mxu0 0
  %153 = vmatprep.subr.bf16.mxu0 0
  %154 = vmatpush1.bf16.msra.mxu0 0
  %155 = vmatprep.subr.bf16.mxu0 0
  %156 = vmatpush1.bf16.msra.mxu0 0
  %157 = vmatprep.subr.bf16.mxu0 0
  %158 = vmatpush1.bf16.msra.mxu0 0
  %159 = vmatprep.subr.bf16.mxu0 0
  %160 = vmatpush1.bf16.msra.mxu0 0
  %161 = vmatprep.subr.bf16.mxu0 0
  %162 = vmatpush1.bf16.msra.mxu0 0
  %163 = vmatprep.subr.bf16.mxu0 0
  %164 = vmatpush1.bf16.msra.mxu0 0
  %165 = vmatprep.subr.bf16.mxu0 0
  %166 = vmatpush1.bf16.msra.mxu0 0
  %167 = vmatprep.subr.bf16.mxu0 0
  %168 = vmatpush1.bf16.msra.mxu0 0
  %169 = vmatprep.mubr.bf16.mxu0 0
  %170 = vmatmul.mubr.bf16.gmra.mrb[0].mxu0 %v114
  %v171 = vpop.f32.mrb[0].mxu0
  %v172 = vadd.f32 %v64, %v171
  %v173 = vpop.f32.mrb[0].mxu0
  %v174 = vpop.f32.mrb[0].mxu0
  %v175 = vadd.f32 %v64, %v174
  %v176 = vpop.f32.mrb[0].mxu0
  %177 = vmatprep.mubr.bf16.mxu0 0
  %178 = vmatmul.mubr.bf16.gmra.mrb[0].mxu0 %v117
  %v179 = vpop.f32.mrb[0].mxu0
  %v180 = vadd.f32 %v64, %v179
  %v181 = vpop.f32.mrb[0].mxu0
  %v182 = vpop.f32.mrb[0].mxu0
  %v183 = vadd.f32 %v64, %v182
  %v184 = vpop.f32.mrb[0].mxu0
  %185 = vmatprep.mubr.bf16.mxu0 0
  %186 = vmatmul.mubr.bf16.gmra.mrb[0].mxu0 %v120
  %v187 = vpop.f32.mrb[0].mxu0
  %v188 = vadd.f32 %v64, %v187
  %v189 = vpop.f32.mrb[0].mxu0
  %v190 = vpop.f32.mrb[0].mxu0
  %v191 = vadd.f32 %v64, %v190
  %v192 = vpop.f32.mrb[0].mxu0
  %193 = vmatprep.mubr.bf16.mxu0 0
  %194 = vmatmul.mubr.bf16.gmra.mrb[0].mxu0 %v123
  %v195 = vpop.f32.mrb[0].mxu0
  %v196 = vadd.f32 %v64, %v195
  %v197 = vpop.f32.mrb[0].mxu0
  %v198 = vpop.f32.mrb[0].mxu0
  %v199 = vadd.f32 %v64, %v198
  %v200 = vpop.f32.mrb[0].mxu0
  %201 = vmatprep.mubr.bf16.mxu0 0
  %202 = vmatmul.mubr.bf16.gmra.mrb[0].mxu0 %v126
  %v203 = vpop.f32.mrb[0].mxu0
  %v204 = vadd.f32 %v64, %v203
  %v205 = vpop.f32.mrb[0].mxu0
  %v206 = vpop.f32.mrb[0].mxu0
  %v207 = vadd.f32 %v64, %v206
  %v208 = vpop.f32.mrb[0].mxu0
  %209 = vmatprep.mubr.bf16.mxu0 0
  %210 = vmatmul.mubr.bf16.gmra.mrb[0].mxu0 %v129
  %v211 = vpop.f32.mrb[0].mxu0
  %v212 = vadd.f32 %v64, %v211
  %v213 = vpop.f32.mrb[0].mxu0
  %v214 = vpop.f32.mrb[0].mxu0
  %v215 = vadd.f32 %v64, %v214
  %v216 = vpop.f32.mrb[0].mxu0
  %217 = vmatprep.mubr.bf16.mxu0 0
  %218 = vmatmul.mubr.bf16.gmra.mrb[0].mxu0 %v132
  %v219 = vpop.f32.mrb[0].mxu0
  %v220 = vadd.f32 %v64, %v219
  %v221 = vpop.f32.mrb[0].mxu0
  %v222 = vpop.f32.mrb[0].mxu0
  %v223 = vadd.f32 %v64, %v222
  %v224 = vpop.f32.mrb[0].mxu0
  %225 = vmatprep.mubr.bf16.mxu0 0
  %226 = vmatmul.mubr.bf16.gmra.mrb[0].mxu0 %v135
  %v227 = vpop.f32.mrb[0].mxu0
  %v228 = vadd.f32 %v64, %v227
  %v229 = vpop.f32.mrb[0].mxu0
  %v230 = vpop.f32.mrb[0].mxu0
  %v231 = vadd.f32 %v64, %v230
  %v232 = vpop.f32.mrb[0].mxu0
  %233 = vdwg.mxu0
  %v234 = vld [vmem:[#allocation2] sm:$0xff]
  %v235 = vld [vmem:[#allocation2 + $0x8] sm:$0xff]
  %v236 = vld [vmem:[#allocation3] sm:$0xff]
  %v237 = vld [vmem:[#allocation3 + $0x8] sm:$0xff]
  %v238 = vpack.c.bf16 %v235, %v234
  %v243 = vunpack.c.l.b16 %v55
  %v244 = vunpack.c.l.b16 %v56
  %v245 = vunpack.c.l.b16 %v57
  %v246 = vunpack.c.l.b16 %v58
  %v247 = vpack.c.b16 %v244, %v243
  %v248 = vpack.c.b16 %v246, %v245
  %vm251 = vcmask 261120
  %v253 = vsel %vm251, %v238, 0
  %255 = vmatprep.subr.bf16.mxu0 0
  %256 = vmatpush1.bf16.msra.mxu0 %v247
  %257 = vmatprep.subr.bf16.mxu0 0
  %258 = vmatpush1.bf16.msra.mxu0 %v248
  %259 = vmatprep.subr.bf16.mxu0 0
  %260 = vmatpush1.bf16.msra.mxu0 0
  %261 = vmatprep.subr.bf16.mxu0 0
  %262 = vmatpush1.bf16.msra.mxu0 0
  %263 = vmatprep.subr.bf16.mxu0 0
  %264 = vmatpush1.bf16.msra.mxu0 0
  %265 = vmatprep.subr.bf16.mxu0 0
  %266 = vmatpush1.bf16.msra.mxu0 0
  %267 = vmatprep.subr.bf16.mxu0 0
  %268 = vmatpush1.bf16.msra.mxu0 0
  %269 = vmatprep.subr.bf16.mxu0 0
  %270 = vmatpush1.bf16.msra.mxu0 0
  %271 = vmatprep.subr.bf16.mxu0 0
  %272 = vmatpush1.bf16.msra.mxu0 0
  %273 = vmatprep.subr.bf16.mxu0 0
  %274 = vmatpush1.bf16.msra.mxu0 0
  %275 = vmatprep.subr.bf16.mxu0 0
  %276 = vmatpush1.bf16.msra.mxu0 0
  %277 = vmatprep.subr.bf16.mxu0 0
  %278 = vmatpush1.bf16.msra.mxu0 0
  %279 = vmatprep.subr.bf16.mxu0 0
  %280 = vmatpush1.bf16.msra.mxu0 0
  %281 = vmatprep.subr.bf16.mxu0 0
  %282 = vmatpush1.bf16.msra.mxu0 0
  %283 = vmatprep.subr.bf16.mxu0 0
  %284 = vmatpush1.bf16.msra.mxu0 0
  %285 = vmatprep.subr.bf16.mxu0 0
  %286 = vmatpush1.bf16.msra.mxu0 0
  %287 = vmatprep.mubr.bf16.mxu0 0
  %288 = vmatmul.mubr.bf16.gmra.mrb[0].mxu0 %v253
  %v289 = vpop.f32.mrb[0].mxu0
  %v290 = vadd.f32 0.0, %v289
  %v291 = vpop.f32.mrb[0].mxu0
  %v292 = vpop.f32.mrb[0].mxu0
  %v293 = vadd.f32 0.0, %v292
  %v294 = vpop.f32.mrb[0].mxu0
  %295 = vdwg.mxu0
  %v296 = vadd.f32 %v172, %v290
  %v297 = vadd.f32 %v175, %v293
  %v298 = vxor.u32 %v296, 2147483648
  %v299 = vxor.u32 %v297, 2147483648
  %v300 = vmul.f32 %v298, 1.442695
  %v301 = vpow.pop %v300
  %v302 = vmul.f32 %v299, 1.442695
  %v303 = vpow.pop %v302
  %v304 = vadd.f32 %v301, 1.0
  %v305 = vadd.f32 %v303, 1.0
  %v306 = vrcp.pop %v304
  %v307 = vmul.f32 1.0, %v306
  %v308 = vrcp.pop %v305
  %v309 = vmul.f32 1.0, %v308
  %v310 = vtanh.pop %v296
  %v311 = vtanh.pop %v297
  %314 = vrot.lane.b32.xlu0 %v236, 32
  %v315 = vpop.permute.xlu0 %314
  %316 = vrot.lane.b32.xlu0 %v237, 32
  %v317 = vpop.permute.xlu0 %316
  %v320 = vmul.f32 %v307, %v315
  %v321 = vmul.f32 %v309, %v317
  %324 = vrot.lane.b32.xlu0 %v310, 32
  %v325 = vpop.permute.xlu0 %324
  %326 = vrot.lane.b32.xlu0 %v311, 32
  %v327 = vpop.permute.xlu0 %326
  %v330 = vmul.f32 %v307, %v325
  %v331 = vmul.f32 %v309, %v327
  %334 = vrot.lane.b32.xlu0 %v330, 32
  %v335 = vpop.permute.xlu0 %334
  %336 = vrot.lane.b32.xlu0 %v331, 32
  %v337 = vpop.permute.xlu0 %336
  %v340 = vadd.f32 %v320, %v335
  %v341 = vadd.f32 %v321, %v337
  %v342 = vtanh.pop %v340
  %v343 = vtanh.pop %v341
  %346 = vrot.lane.b32.xlu0 %v342, 32
  %v347 = vpop.permute.xlu0 %346
  %348 = vrot.lane.b32.xlu0 %v343, 32
  %v349 = vpop.permute.xlu0 %348
  %v352 = vmul.f32 %v307, %v347
  %v353 = vmul.f32 %v309, %v349
  %v354 = vpack.c.bf16 %v353, %v352
  %356 = vrot.lane.b32.xlu0 %v354, 64
  %v357 = vpop.permute.xlu0 %356
  %359 = vst.msk [vmem:[#allocation4] sm:$0xff] %vm251, %v357
  %v361 = vsel %vm251, %v357, 0
  %363 = vmatprep.subr.bf16.mxu0 0
  %364 = vmatpush1.bf16.msra.mxu0 %v247
  %365 = vmatprep.subr.bf16.mxu0 0
  %366 = vmatpush1.bf16.msra.mxu0 %v248
  %367 = vmatprep.subr.bf16.mxu0 0
  %368 = vmatpush1.bf16.msra.mxu0 0
  %369 = vmatprep.subr.bf16.mxu0 0
  %370 = vmatpush1.bf16.msra.mxu0 0
  %371 = vmatprep.subr.bf16.mxu0 0
  %372 = vmatpush1.bf16.msra.mxu0 0
  %373 = vmatprep.subr.bf16.mxu0 0
  %374 = vmatpush1.bf16.msra.mxu0 0
  %375 = vmatprep.subr.bf16.mxu0 0
  %376 = vmatpush1.bf16.msra.mxu0 0
  %377 = vmatprep.subr.bf16.mxu0 0
  %378 = vmatpush1.bf16.msra.mxu0 0
  %379 = vmatprep.subr.bf16.mxu0 0
  %380 = vmatpush1.bf16.msra.mxu0 0
  %381 = vmatprep.subr.bf16.mxu0 0
  %382 = vmatpush1.bf16.msra.mxu0 0
  %383 = vmatprep.subr.bf16.mxu0 0
  %384 = vmatpush1.bf16.msra.mxu0 0
  %385 = vmatprep.subr.bf16.mxu0 0
  %386 = vmatpush1.bf16.msra.mxu0 0
  %387 = vmatprep.subr.bf16.mxu0 0
  %388 = vmatpush1.bf16.msra.mxu0 0
  %389 = vmatprep.subr.bf16.mxu0 0
  %390 = vmatpush1.bf16.msra.mxu0 0
  %391 = vmatprep.subr.bf16.mxu0 0
  %392 = vmatpush1.bf16.msra.mxu0 0
  %393 = vmatprep.subr.bf16.mxu0 0
  %394 = vmatpush1.bf16.msra.mxu0 0
  %395 = vmatprep.mubr.bf16.mxu0 0
  %396 = vmatmul.mubr.bf16.gmra.mrb[0].mxu0 %v361
  %v397 = vpop.f32.mrb[0].mxu0
  %v398 = vadd.f32 0.0, %v397
  %v399 = vpop.f32.mrb[0].mxu0
  %v400 = vpop.f32.mrb[0].mxu0
  %v401 = vadd.f32 0.0, %v400
  %v402 = vpop.f32.mrb[0].mxu0
  %403 = vdwg.mxu0
  %v404 = vadd.f32 %v180, %v398
  %v405 = vadd.f32 %v183, %v401
  %v406 = vxor.u32 %v404, 2147483648
  %v407 = vxor.u32 %v405, 2147483648
  %v408 = vmul.f32 %v406, 1.442695
  %v409 = vpow.pop %v408
  %v410 = vmul.f32 %v407, 1.442695
  %v411 = vpow.pop %v410
  %v412 = vadd.f32 %v409, 1.0
  %v413 = vadd.f32 %v411, 1.0
  %v414 = vrcp.pop %v412
  %v415 = vmul.f32 1.0, %v414
  %v416 = vrcp.pop %v413
  %v417 = vmul.f32 1.0, %v416
  %v418 = vtanh.pop %v404
  %v419 = vtanh.pop %v405
  %v420 = vmul.f32 %v415, %v340
  %v421 = vmul.f32 %v417, %v341
  %424 = vrot.lane.b32.xlu0 %v418, 32
  %v425 = vpop.permute.xlu0 %424
  %426 = vrot.lane.b32.xlu0 %v419, 32
  %v427 = vpop.permute.xlu0 %426
  %v430 = vmul.f32 %v415, %v425
  %v431 = vmul.f32 %v417, %v427
  %434 = vrot.lane.b32.xlu0 %v430, 32
  %v435 = vpop.permute.xlu0 %434
  %436 = vrot.lane.b32.xlu0 %v431, 32
  %v437 = vpop.permute.xlu0 %436
  %v440 = vadd.f32 %v420, %v435
  %v441 = vadd.f32 %v421, %v437
  %v442 = vtanh.pop %v440
  %v443 = vtanh.pop %v441
  %446 = vrot.lane.b32.xlu0 %v442, 32
  %v447 = vpop.permute.xlu0 %446
  %448 = vrot.lane.b32.xlu0 %v443, 32
  %v449 = vpop.permute.xlu0 %448
  %v452 = vmul.f32 %v415, %v447
  %v453 = vmul.f32 %v417, %v449
  %v454 = vpack.c.bf16 %v453, %v452
  %456 = vrot.lane.b32.xlu0 %v454, 64
  %v457 = vpop.permute.xlu0 %456
  %459 = vst.msk [vmem:[#allocation4 + $0x8] sm:$0xff] %vm251, %v457
  %v461 = vsel %vm251, %v457, 0
  %463 = vmatprep.subr.bf16.mxu0 0
  %464 = vmatpush1.bf16.msra.mxu0 %v247
  %465 = vmatprep.subr.bf16.mxu0 0
  %466 = vmatpush1.bf16.msra.mxu0 %v248
  %467 = vmatprep.subr.bf16.mxu0 0
  %468 = vmatpush1.bf16.msra.mxu0 0
  %469 = vmatprep.subr.bf16.mxu0 0
  %470 = vmatpush1.bf16.msra.mxu0 0
  %471 = vmatprep.subr.bf16.mxu0 0
  %472 = vmatpush1.bf16.msra.mxu0 0
  %473 = vmatprep.subr.bf16.mxu0 0
  %474 = vmatpush1.bf16.msra.mxu0 0
  %475 = vmatprep.subr.bf16.mxu0 0
  %476 = vmatpush1.bf16.msra.mxu0 0
  %477 = vmatprep.subr.bf16.mxu0 0
  %478 = vmatpush1.bf16.msra.mxu0 0
  %479 = vmatprep.subr.bf16.mxu0 0
  %480 = vmatpush1.bf16.msra.mxu0 0
  %481 = vmatprep.subr.bf16.mxu0 0
  %482 = vmatpush1.bf16.msra.mxu0 0
  %483 = vmatprep.subr.bf16.mxu0 0
  %484 = vmatpush1.bf16.msra.mxu0 0
  %485 = vmatprep.subr.bf16.mxu0 0
  %486 = vmatpush1.bf16.msra.mxu0 0
  %487 = vmatprep.subr.bf16.mxu0 0
  %488 = vmatpush1.bf16.msra.mxu0 0
  %489 = vmatprep.subr.bf16.mxu0 0
  %490 = vmatpush1.bf16.msra.mxu0 0
  %491 = vmatprep.subr.bf16.mxu0 0
  %492 = vmatpush1.bf16.msra.mxu0 0
  %493 = vmatprep.subr.bf16.mxu0 0
  %494 = vmatpush1.bf16.msra.mxu0 0
  %495 = vmatprep.mubr.bf16.mxu0 0
  %496 = vmatmul.mubr.bf16.gmra.mrb[0].mxu0 %v461
  %v497 = vpop.f32.mrb[0].mxu0
  %v498 = vadd.f32 0.0, %v497
  %v499 = vpop.f32.mrb[0].mxu0
  %v500 = vpop.f32.mrb[0].mxu0
  %v501 = vadd.f32 0.0, %v500
  %v502 = vpop.f32.mrb[0].mxu0
  %503 = vdwg.mxu0
  %v504 = vadd.f32 %v188, %v498
  %v505 = vadd.f32 %v191, %v501
  %v506 = vxor.u32 %v504, 2147483648
  %v507 = vxor.u32 %v505, 2147483648
  %v508 = vmul.f32 %v506, 1.442695
  %v509 = vpow.pop %v508
  %v510 = vmul.f32 %v507, 1.442695
  %v511 = vpow.pop %v510
  %v512 = vadd.f32 %v509, 1.0
  %v513 = vadd.f32 %v511, 1.0
  %v514 = vrcp.pop %v512
  %v515 = vmul.f32 1.0, %v514
  %v516 = vrcp.pop %v513
  %v517 = vmul.f32 1.0, %v516
  %v518 = vtanh.pop %v504
  %v519 = vtanh.pop %v505
  %v520 = vmul.f32 %v515, %v440
  %v521 = vmul.f32 %v517, %v441
  %524 = vrot.lane.b32.xlu0 %v518, 32
  %v525 = vpop.permute.xlu0 %524
  %526 = vrot.lane.b32.xlu0 %v519, 32
  %v527 = vpop.permute.xlu0 %526
  %v530 = vmul.f32 %v515, %v525
  %v531 = vmul.f32 %v517, %v527
  %534 = vrot.lane.b32.xlu0 %v530, 32
  %v535 = vpop.permute.xlu0 %534
  %536 = vrot.lane.b32.xlu0 %v531, 32
  %v537 = vpop.permute.xlu0 %536
  %v540 = vadd.f32 %v520, %v535
  %v541 = vadd.f32 %v521, %v537
  %v542 = vtanh.pop %v540
  %v543 = vtanh.pop %v541
  %546 = vrot.lane.b32.xlu0 %v542, 32
  %v547 = vpop.permute.xlu0 %546
  %548 = vrot.lane.b32.xlu0 %v543, 32
  %v549 = vpop.permute.xlu0 %548
  %v552 = vmul.f32 %v515, %v547
  %v553 = vmul.f32 %v517, %v549
  %v554 = vpack.c.bf16 %v553, %v552
  %556 = vrot.lane.b32.xlu0 %v554, 64
  %v557 = vpop.permute.xlu0 %556
  %559 = vst.msk [vmem:[#allocation4 + $0x10] sm:$0xff] %vm251, %v557
  %v561 = vsel %vm251, %v557, 0
  %563 = vmatprep.subr.bf16.mxu0 0
  %564 = vmatpush1.bf16.msra.mxu0 %v247
  %565 = vmatprep.subr.bf16.mxu0 0
  %566 = vmatpush1.bf16.msra.mxu0 %v248
  %567 = vmatprep.subr.bf16.mxu0 0
  %568 = vmatpush1.bf16.msra.mxu0 0
  %569 = vmatprep.subr.bf16.mxu0 0
  %570 = vmatpush1.bf16.msra.mxu0 0
  %571 = vmatprep.subr.bf16.mxu0 0
  %572 = vmatpush1.bf16.msra.mxu0 0
  %573 = vmatprep.subr.bf16.mxu0 0
  %574 = vmatpush1.bf16.msra.mxu0 0
  %575 = vmatprep.subr.bf16.mxu0 0
  %576 = vmatpush1.bf16.msra.mxu0 0
  %577 = vmatprep.subr.bf16.mxu0 0
  %578 = vmatpush1.bf16.msra.mxu0 0
  %579 = vmatprep.subr.bf16.mxu0 0
  %580 = vmatpush1.bf16.msra.mxu0 0
  %581 = vmatprep.subr.bf16.mxu0 0
  %582 = vmatpush1.bf16.msra.mxu0 0
  %583 = vmatprep.subr.bf16.mxu0 0
  %584 = vmatpush1.bf16.msra.mxu0 0
  %585 = vmatprep.subr.bf16.mxu0 0
  %586 = vmatpush1.bf16.msra.mxu0 0
  %587 = vmatprep.subr.bf16.mxu0 0
  %588 = vmatpush1.bf16.msra.mxu0 0
  %589 = vmatprep.subr.bf16.mxu0 0
  %590 = vmatpush1.bf16.msra.mxu0 0
  %591 = vmatprep.subr.bf16.mxu0 0
  %592 = vmatpush1.bf16.msra.mxu0 0
  %593 = vmatprep.subr.bf16.mxu0 0
  %594 = vmatpush1.bf16.msra.mxu0 0
  %595 = vmatprep.mubr.bf16.mxu0 0
  %596 = vmatmul.mubr.bf16.gmra.mrb[0].mxu0 %v561
  %v597 = vpop.f32.mrb[0].mxu0
  %v598 = vadd.f32 0.0, %v597
  %v599 = vpop.f32.mrb[0].mxu0
  %v600 = vpop.f32.mrb[0].mxu0
  %v601 = vadd.f32 0.0, %v600
  %v602 = vpop.f32.mrb[0].mxu0
  %603 = vdwg.mxu0
  %v604 = vadd.f32 %v196, %v598
  %v605 = vadd.f32 %v199, %v601
  %v606 = vxor.u32 %v604, 2147483648
  %v607 = vxor.u32 %v605, 2147483648
  %v608 = vmul.f32 %v606, 1.442695
  %v609 = vpow.pop %v608
  %v610 = vmul.f32 %v607, 1.442695
  %v611 = vpow.pop %v610
  %v612 = vadd.f32 %v609, 1.0
  %v613 = vadd.f32 %v611, 1.0
  %v614 = vrcp.pop %v612
  %v615 = vmul.f32 1.0, %v614
  %v616 = vrcp.pop %v613
  %v617 = vmul.f32 1.0, %v616
  %v618 = vtanh.pop %v604
  %v619 = vtanh.pop %v605
  %v620 = vmul.f32 %v615, %v540
  %v621 = vmul.f32 %v617, %v541
  %624 = vrot.lane.b32.xlu0 %v618, 32
  %v625 = vpop.permute.xlu0 %624
  %626 = vrot.lane.b32.xlu0 %v619, 32
  %v627 = vpop.permute.xlu0 %626
  %v630 = vmul.f32 %v615, %v625
  %v631 = vmul.f32 %v617, %v627
  %634 = vrot.lane.b32.xlu0 %v630, 32
  %v635 = vpop.permute.xlu0 %634
  %636 = vrot.lane.b32.xlu0 %v631, 32
  %v637 = vpop.permute.xlu0 %636
  %v640 = vadd.f32 %v620, %v635
  %v641 = vadd.f32 %v621, %v637
  %v642 = vtanh.pop %v640
  %v643 = vtanh.pop %v641
  %646 = vrot.lane.b32.xlu0 %v642, 32
  %v647 = vpop.permute.xlu0 %646
  %648 = vrot.lane.b32.xlu0 %v643, 32
  %v649 = vpop.permute.xlu0 %648
  %v652 = vmul.f32 %v615, %v647
  %v653 = vmul.f32 %v617, %v649
  %v654 = vpack.c.bf16 %v653, %v652
  %656 = vrot.lane.b32.xlu0 %v654, 64
  %v657 = vpop.permute.xlu0 %656
  %659 = vst.msk [vmem:[#allocation4 + $0x18] sm:$0xff] %vm251, %v657
  %v661 = vsel %vm251, %v657, 0
  %663 = vmatprep.subr.bf16.mxu0 0
  %664 = vmatpush1.bf16.msra.mxu0 %v247
  %665 = vmatprep.subr.bf16.mxu0 0
  %666 = vmatpush1.bf16.msra.mxu0 %v248
  %667 = vmatprep.subr.bf16.mxu0 0
  %668 = vmatpush1.bf16.msra.mxu0 0
  %669 = vmatprep.subr.bf16.mxu0 0
  %670 = vmatpush1.bf16.msra.mxu0 0
  %671 = vmatprep.subr.bf16.mxu0 0
  %672 = vmatpush1.bf16.msra.mxu0 0
  %673 = vmatprep.subr.bf16.mxu0 0
  %674 = vmatpush1.bf16.msra.mxu0 0
  %675 = vmatprep.subr.bf16.mxu0 0
  %676 = vmatpush1.bf16.msra.mxu0 0
  %677 = vmatprep.subr.bf16.mxu0 0
  %678 = vmatpush1.bf16.msra.mxu0 0
  %679 = vmatprep.subr.bf16.mxu0 0
  %680 = vmatpush1.bf16.msra.mxu0 0
  %681 = vmatprep.subr.bf16.mxu0 0
  %682 = vmatpush1.bf16.msra.mxu0 0
  %683 = vmatprep.subr.bf16.mxu0 0
  %684 = vmatpush1.bf16.msra.mxu0 0
  %685 = vmatprep.subr.bf16.mxu0 0
  %686 = vmatpush1.bf16.msra.mxu0 0
  %687 = vmatprep.subr.bf16.mxu0 0
  %688 = vmatpush1.bf16.msra.mxu0 0
  %689 = vmatprep.subr.bf16.mxu0 0
  %690 = vmatpush1.bf16.msra.mxu0 0
  %691 = vmatprep.subr.bf16.mxu0 0
  %692 = vmatpush1.bf16.msra.mxu0 0
  %693 = vmatprep.subr.bf16.mxu0 0
  %694 = vmatpush1.bf16.msra.mxu0 0
  %695 = vmatprep.mubr.bf16.mxu0 0
  %696 = vmatmul.mubr.bf16.gmra.mrb[0].mxu0 %v661
  %v697 = vpop.f32.mrb[0].mxu0
  %v698 = vadd.f32 0.0, %v697
  %v699 = vpop.f32.mrb[0].mxu0
  %v700 = vpop.f32.mrb[0].mxu0
  %v701 = vadd.f32 0.0, %v700
  %v702 = vpop.f32.mrb[0].mxu0
  %703 = vdwg.mxu0
  %v704 = vadd.f32 %v204, %v698
  %v705 = vadd.f32 %v207, %v701
  %v706 = vxor.u32 %v704, 2147483648
  %v707 = vxor.u32 %v705, 2147483648
  %v708 = vmul.f32 %v706, 1.442695
  %v709 = vpow.pop %v708
  %v710 = vmul.f32 %v707, 1.442695
  %v711 = vpow.pop %v710
  %v712 = vadd.f32 %v709, 1.0
  %v713 = vadd.f32 %v711, 1.0
  %v714 = vrcp.pop %v712
  %v715 = vmul.f32 1.0, %v714
  %v716 = vrcp.pop %v713
  %v717 = vmul.f32 1.0, %v716
  %v718 = vtanh.pop %v704
  %v719 = vtanh.pop %v705
  %v720 = vmul.f32 %v715, %v640
  %v721 = vmul.f32 %v717, %v641
  %724 = vrot.lane.b32.xlu0 %v718, 32
  %v725 = vpop.permute.xlu0 %724
  %726 = vrot.lane.b32.xlu0 %v719, 32
  %v727 = vpop.permute.xlu0 %726
  %v730 = vmul.f32 %v715, %v725
  %v731 = vmul.f32 %v717, %v727
  %734 = vrot.lane.b32.xlu0 %v730, 32
  %v735 = vpop.permute.xlu0 %734
  %736 = vrot.lane.b32.xlu0 %v731, 32
  %v737 = vpop.permute.xlu0 %736
  %v740 = vadd.f32 %v720, %v735
  %v741 = vadd.f32 %v721, %v737
  %v742 = vtanh.pop %v740
  %v743 = vtanh.pop %v741
  %746 = vrot.lane.b32.xlu0 %v742, 32
  %v747 = vpop.permute.xlu0 %746
  %748 = vrot.lane.b32.xlu0 %v743, 32
  %v749 = vpop.permute.xlu0 %748
  %v752 = vmul.f32 %v715, %v747
  %v753 = vmul.f32 %v717, %v749
  %v754 = vpack.c.bf16 %v753, %v752
  %756 = vrot.lane.b32.xlu0 %v754, 64
  %v757 = vpop.permute.xlu0 %756
  %759 = vst.msk [vmem:[#allocation4 + $0x20] sm:$0xff] %vm251, %v757
  %v761 = vsel %vm251, %v757, 0
  %763 = vmatprep.subr.bf16.mxu0 0
  %764 = vmatpush1.bf16.msra.mxu0 %v247
  %765 = vmatprep.subr.bf16.mxu0 0
  %766 = vmatpush1.bf16.msra.mxu0 %v248
  %767 = vmatprep.subr.bf16.mxu0 0
  %768 = vmatpush1.bf16.msra.mxu0 0
  %769 = vmatprep.subr.bf16.mxu0 0
  %770 = vmatpush1.bf16.msra.mxu0 0
  %771 = vmatprep.subr.bf16.mxu0 0
  %772 = vmatpush1.bf16.msra.mxu0 0
  %773 = vmatprep.subr.bf16.mxu0 0
  %774 = vmatpush1.bf16.msra.mxu0 0
  %775 = vmatprep.subr.bf16.mxu0 0
  %776 = vmatpush1.bf16.msra.mxu0 0
  %777 = vmatprep.subr.bf16.mxu0 0
  %778 = vmatpush1.bf16.msra.mxu0 0
  %779 = vmatprep.subr.bf16.mxu0 0
  %780 = vmatpush1.bf16.msra.mxu0 0
  %781 = vmatprep.subr.bf16.mxu0 0
  %782 = vmatpush1.bf16.msra.mxu0 0
  %783 = vmatprep.subr.bf16.mxu0 0
  %784 = vmatpush1.bf16.msra.mxu0 0
  %785 = vmatprep.subr.bf16.mxu0 0
  %786 = vmatpush1.bf16.msra.mxu0 0
  %787 = vmatprep.subr.bf16.mxu0 0
  %788 = vmatpush1.bf16.msra.mxu0 0
  %789 = vmatprep.subr.bf16.mxu0 0
  %790 = vmatpush1.bf16.msra.mxu0 0
  %791 = vmatprep.subr.bf16.mxu0 0
  %792 = vmatpush1.bf16.msra.mxu0 0
  %793 = vmatprep.subr.bf16.mxu0 0
  %794 = vmatpush1.bf16.msra.mxu0 0
  %795 = vmatprep.mubr.bf16.mxu0 0
  %796 = vmatmul.mubr.bf16.gmra.mrb[0].mxu0 %v761
  %v797 = vpop.f32.mrb[0].mxu0
  %v798 = vadd.f32 0.0, %v797
  %v799 = vpop.f32.mrb[0].mxu0
  %v800 = vpop.f32.mrb[0].mxu0
  %v801 = vadd.f32 0.0, %v800
  %v802 = vpop.f32.mrb[0].mxu0
  %803 = vdwg.mxu0
  %v804 = vadd.f32 %v212, %v798
  %v805 = vadd.f32 %v215, %v801
  %v806 = vxor.u32 %v804, 2147483648
  %v807 = vxor.u32 %v805, 2147483648
  %v808 = vmul.f32 %v806, 1.442695
  %v809 = vpow.pop %v808
  %v810 = vmul.f32 %v807, 1.442695
  %v811 = vpow.pop %v810
  %v812 = vadd.f32 %v809, 1.0
  %v813 = vadd.f32 %v811, 1.0
  %v814 = vrcp.pop %v812
  %v815 = vmul.f32 1.0, %v814
  %v816 = vrcp.pop %v813
  %v817 = vmul.f32 1.0, %v816
  %v818 = vtanh.pop %v804
  %v819 = vtanh.pop %v805
  %v820 = vmul.f32 %v815, %v740
  %v821 = vmul.f32 %v817, %v741
  %824 = vrot.lane.b32.xlu0 %v818, 32
  %v825 = vpop.permute.xlu0 %824
  %826 = vrot.lane.b32.xlu0 %v819, 32
  %v827 = vpop.permute.xlu0 %826
  %v830 = vmul.f32 %v815, %v825
  %v831 = vmul.f32 %v817, %v827
  %834 = vrot.lane.b32.xlu0 %v830, 32
  %v835 = vpop.permute.xlu0 %834
  %836 = vrot.lane.b32.xlu0 %v831, 32
  %v837 = vpop.permute.xlu0 %836
  %v840 = vadd.f32 %v820, %v835
  %v841 = vadd.f32 %v821, %v837
  %v842 = vtanh.pop %v840
  %v843 = vtanh.pop %v841
  %846 = vrot.lane.b32.xlu0 %v842, 32
  %v847 = vpop.permute.xlu0 %846
  %848 = vrot.lane.b32.xlu0 %v843, 32
  %v849 = vpop.permute.xlu0 %848
  %v852 = vmul.f32 %v815, %v847
  %v853 = vmul.f32 %v817, %v849
  %v854 = vpack.c.bf16 %v853, %v852
  %856 = vrot.lane.b32.xlu0 %v854, 64
  %v857 = vpop.permute.xlu0 %856
  %859 = vst.msk [vmem:[#allocation4 + $0x28] sm:$0xff] %vm251, %v857
  %v861 = vsel %vm251, %v857, 0
  %863 = vmatprep.subr.bf16.mxu0 0
  %864 = vmatpush1.bf16.msra.mxu0 %v247
  %865 = vmatprep.subr.bf16.mxu0 0
  %866 = vmatpush1.bf16.msra.mxu0 %v248
  %867 = vmatprep.subr.bf16.mxu0 0
  %868 = vmatpush1.bf16.msra.mxu0 0
  %869 = vmatprep.subr.bf16.mxu0 0
  %870 = vmatpush1.bf16.msra.mxu0 0
  %871 = vmatprep.subr.bf16.mxu0 0
  %872 = vmatpush1.bf16.msra.mxu0 0
  %873 = vmatprep.subr.bf16.mxu0 0
  %874 = vmatpush1.bf16.msra.mxu0 0
  %875 = vmatprep.subr.bf16.mxu0 0
  %876 = vmatpush1.bf16.msra.mxu0 0
  %877 = vmatprep.subr.bf16.mxu0 0
  %878 = vmatpush1.bf16.msra.mxu0 0
  %879 = vmatprep.subr.bf16.mxu0 0
  %880 = vmatpush1.bf16.msra.mxu0 0
  %881 = vmatprep.subr.bf16.mxu0 0
  %882 = vmatpush1.bf16.msra.mxu0 0
  %883 = vmatprep.subr.bf16.mxu0 0
  %884 = vmatpush1.bf16.msra.mxu0 0
  %885 = vmatprep.subr.bf16.mxu0 0
  %886 = vmatpush1.bf16.msra.mxu0 0
  %887 = vmatprep.subr.bf16.mxu0 0
  %888 = vmatpush1.bf16.msra.mxu0 0
  %889 = vmatprep.subr.bf16.mxu0 0
  %890 = vmatpush1.bf16.msra.mxu0 0
  %891 = vmatprep.subr.bf16.mxu0 0
  %892 = vmatpush1.bf16.msra.mxu0 0
  %893 = vmatprep.subr.bf16.mxu0 0
  %894 = vmatpush1.bf16.msra.mxu0 0
  %895 = vmatprep.mubr.bf16.mxu0 0
  %896 = vmatmul.mubr.bf16.gmra.mrb[0].mxu0 %v861
  %v897 = vpop.f32.mrb[0].mxu0
  %v898 = vadd.f32 0.0, %v897
  %v899 = vpop.f32.mrb[0].mxu0
  %v900 = vpop.f32.mrb[0].mxu0
  %v901 = vadd.f32 0.0, %v900
  %v902 = vpop.f32.mrb[0].mxu0
  %903 = vdwg.mxu0
  %v904 = vadd.f32 %v220, %v898
  %v905 = vadd.f32 %v223, %v901
  %v906 = vxor.u32 %v904, 2147483648
  %v907 = vxor.u32 %v905, 2147483648
  %v908 = vmul.f32 %v906, 1.442695
  %v909 = vpow.pop %v908
  %v910 = vmul.f32 %v907, 1.442695
  %v911 = vpow.pop %v910
  %v912 = vadd.f32 %v909, 1.0
  %v913 = vadd.f32 %v911, 1.0
  %v914 = vrcp.pop %v912
  %v915 = vmul.f32 1.0, %v914
  %v916 = vrcp.pop %v913
  %v917 = vmul.f32 1.0, %v916
  %v918 = vtanh.pop %v904
  %v919 = vtanh.pop %v905
  %v920 = vmul.f32 %v915, %v840
  %v921 = vmul.f32 %v917, %v841
  %924 = vrot.lane.b32.xlu0 %v918, 32
  %v925 = vpop.permute.xlu0 %924
  %926 = vrot.lane.b32.xlu0 %v919, 32
  %v927 = vpop.permute.xlu0 %926
  %v930 = vmul.f32 %v915, %v925
  %v931 = vmul.f32 %v917, %v927
  %934 = vrot.lane.b32.xlu0 %v930, 32
  %v935 = vpop.permute.xlu0 %934
  %936 = vrot.lane.b32.xlu0 %v931, 32
  %v937 = vpop.permute.xlu0 %936
  %v940 = vadd.f32 %v920, %v935
  %v941 = vadd.f32 %v921, %v937
  %v942 = vtanh.pop %v940
  %v943 = vtanh.pop %v941
  %946 = vrot.lane.b32.xlu0 %v942, 32
  %v947 = vpop.permute.xlu0 %946
  %948 = vrot.lane.b32.xlu0 %v943, 32
  %v949 = vpop.permute.xlu0 %948
  %v952 = vmul.f32 %v915, %v947
  %v953 = vmul.f32 %v917, %v949
  %v954 = vpack.c.bf16 %v953, %v952
  %956 = vrot.lane.b32.xlu0 %v954, 64
  %v957 = vpop.permute.xlu0 %956
  %959 = vst.msk [vmem:[#allocation4 + $0x30] sm:$0xff] %vm251, %v957
  %v961 = vsel %vm251, %v957, 0
  %963 = vmatprep.subr.bf16.mxu0 0
  %964 = vmatpush1.bf16.msra.mxu0 %v247
  %965 = vmatprep.subr.bf16.mxu0 0
  %966 = vmatpush1.bf16.msra.mxu0 %v248
  %967 = vmatprep.subr.bf16.mxu0 0
  %968 = vmatpush1.bf16.msra.mxu0 0
  %969 = vmatprep.subr.bf16.mxu0 0
  %970 = vmatpush1.bf16.msra.mxu0 0
  %971 = vmatprep.subr.bf16.mxu0 0
  %972 = vmatpush1.bf16.msra.mxu0 0
  %973 = vmatprep.subr.bf16.mxu0 0
  %974 = vmatpush1.bf16.msra.mxu0 0
  %975 = vmatprep.subr.bf16.mxu0 0
  %976 = vmatpush1.bf16.msra.mxu0 0
  %977 = vmatprep.subr.bf16.mxu0 0
  %978 = vmatpush1.bf16.msra.mxu0 0
  %979 = vmatprep.subr.bf16.mxu0 0
  %980 = vmatpush1.bf16.msra.mxu0 0
  %981 = vmatprep.subr.bf16.mxu0 0
  %982 = vmatpush1.bf16.msra.mxu0 0
  %983 = vmatprep.subr.bf16.mxu0 0
  %984 = vmatpush1.bf16.msra.mxu0 0
  %985 = vmatprep.subr.bf16.mxu0 0
  %986 = vmatpush1.bf16.msra.mxu0 0
  %987 = vmatprep.subr.bf16.mxu0 0
  %988 = vmatpush1.bf16.msra.mxu0 0
  %989 = vmatprep.subr.bf16.mxu0 0
  %990 = vmatpush1.bf16.msra.mxu0 0
  %991 = vmatprep.subr.bf16.mxu0 0
  %992 = vmatpush1.bf16.msra.mxu0 0
  %993 = vmatprep.subr.bf16.mxu0 0
  %994 = vmatpush1.bf16.msra.mxu0 0
  %995 = vmatprep.mubr.bf16.mxu0 0
  %996 = vmatmul.mubr.bf16.gmra.mrb[0].mxu0 %v961
  %v997 = vpop.f32.mrb[0].mxu0
  %v998 = vadd.f32 0.0, %v997
  %v999 = vpop.f32.mrb[0].mxu0
  %v1000 = vpop.f32.mrb[0].mxu0
  %v1001 = vadd.f32 0.0, %v1000
  %v1002 = vpop.f32.mrb[0].mxu0
  %1003 = vdwg.mxu0
  %v1004 = vadd.f32 %v228, %v998
  %v1005 = vadd.f32 %v231, %v1001
  %v1006 = vxor.u32 %v1004, 2147483648
  %v1007 = vxor.u32 %v1005, 2147483648
  %v1008 = vmul.f32 %v1006, 1.442695
  %v1009 = vpow.pop %v1008
  %v1010 = vmul.f32 %v1007, 1.442695
  %v1011 = vpow.pop %v1010
  %v1012 = vadd.f32 %v1009, 1.0
  %v1013 = vadd.f32 %v1011, 1.0
  %v1014 = vrcp.pop %v1012
  %v1015 = vmul.f32 1.0, %v1014
  %v1016 = vrcp.pop %v1013
  %v1017 = vmul.f32 1.0, %v1016
  %v1018 = vtanh.pop %v1004
  %v1019 = vtanh.pop %v1005
  %v1020 = vmul.f32 %v1015, %v940
  %v1021 = vmul.f32 %v1017, %v941
  %1024 = vrot.lane.b32.xlu0 %v1018, 32
  %v1025 = vpop.permute.xlu0 %1024
  %1026 = vrot.lane.b32.xlu0 %v1019, 32
  %v1027 = vpop.permute.xlu0 %1026
  %v1030 = vmul.f32 %v1015, %v1025
  %v1031 = vmul.f32 %v1017, %v1027
  %1034 = vrot.lane.b32.xlu0 %v1030, 32
  %v1035 = vpop.permute.xlu0 %1034
  %1036 = vrot.lane.b32.xlu0 %v1031, 32
  %v1037 = vpop.permute.xlu0 %1036
  %v1040 = vadd.f32 %v1020, %v1035
  %v1041 = vadd.f32 %v1021, %v1037
  %v1042 = vtanh.pop %v1040
  %v1043 = vtanh.pop %v1041
  %1046 = vrot.lane.b32.xlu0 %v1042, 32
  %v1047 = vpop.permute.xlu0 %1046
  %1048 = vrot.lane.b32.xlu0 %v1043, 32
  %v1049 = vpop.permute.xlu0 %1048
  %v1052 = vmul.f32 %v1015, %v1047
  %v1053 = vmul.f32 %v1017, %v1049
  %v1054 = vpack.c.bf16 %v1053, %v1052
  %1056 = vrot.lane.b32.xlu0 %v1054, 64
  %v1057 = vpop.permute.xlu0 %1056
  %1059 = vst.msk [vmem:[#allocation4 + $0x38] sm:$0xff] %vm251, %v1057
  %1062 = vrot.lane.b32.xlu0 %v1052, 64
  %v1063 = vpop.permute.xlu0 %1062
  %1064 = vrot.lane.b32.xlu0 %v1053, 64
  %v1065 = vpop.permute.xlu0 %1064
  %1068 = vst.msk [vmem:[#allocation2] sm:$0xff] %vm251, %v1063
  %1069 = vst.msk [vmem:[#allocation2 + $0x8] sm:$0xff] %vm251, %v1065
  %1072 = vrot.lane.b32.xlu0 %v1040, 96
  %v1073 = vpop.permute.xlu0 %1072
  %1074 = vrot.lane.b32.xlu0 %v1041, 96
  %v1075 = vpop.permute.xlu0 %1074
  %1078 = vst.msk [vmem:[#allocation3] sm:$0xff] %vm251, %v1073
  %1079 = vst.msk [vmem:[#allocation3 + $0x8] sm:$0xff] %vm251, %v1075
  %v1080 = vld [vmem:[#allocation4] sm:$0xff]
  %v1081 = vld [vmem:[#allocation4 + $0x8] sm:$0xff]
  %v1082 = vld [vmem:[#allocation4 + $0x10] sm:$0xff]
  %v1083 = vld [vmem:[#allocation4 + $0x18] sm:$0xff]
  %v1084 = vld [vmem:[#allocation4 + $0x20] sm:$0xff]
  %v1085 = vld [vmem:[#allocation4 + $0x28] sm:$0xff]
  %v1086 = vld [vmem:[#allocation4 + $0x30] sm:$0xff]
  %v1087 = vld [vmem:[#allocation4 + $0x38] sm:$0xff]
  %s1088 = scalar_lea.vmem %s1, 16
  %v1089 = vld [vmem:[%s1088] sm:$0xf]
  %v1090 = vld [vmem:[%s1088 + $0x4] sm:$0xf]
  %v1091 = vld [vmem:[%s1088 + $0x8] sm:$0xf]
  %v1092 = vld [vmem:[%s1088 + $0xc] sm:$0xf]
  %s1093 = scalar_lea.vmem %s2, 16
  %v1094 = vld [vmem:[%s1093] sm:$0xf]
  %v1095 = vld [vmem:[%s1093 + $0x4] sm:$0xf]
  %v1096 = vld [vmem:[%s1093 + $0x8] sm:$0xf]
  %v1097 = vld [vmem:[%s1093 + $0xc] sm:$0xf]
  %s1098 = scalar_lea.vmem %s3, 1
  %v1099 = vld [vmem:[%s1098] sm:$0x1]
  %v1101 = vlaneseq
  %v1102 = vshrl.u32 %v1101, 7
  %v1103 = vsub.s32 0, %v1102
  %v1104 = vrot.slane %v1099, %v1103
  %v1110 = vunpack.c.l.b16 %v1089
  %v1111 = vunpack.c.l.b16 %v1090
  %v1112 = vunpack.c.l.b16 %v1091
  %v1113 = vunpack.c.l.b16 %v1092
  %v1114 = vpack.c.b16 %v1111, %v1110
  %v1115 = vpack.c.b16 %v1113, %v1112
  %v1119 = vsel %vm251, %v1080, 0
  %v1122 = vsel %vm251, %v1081, 0
  %v1125 = vsel %vm251, %v1082, 0
  %v1128 = vsel %vm251, %v1083, 0
  %v1131 = vsel %vm251, %v1084, 0
  %v1134 = vsel %vm251, %v1085, 0
  %v1137 = vsel %vm251, %v1086, 0
  %v1140 = vsel %vm251, %v1087, 0
  %1142 = vmatprep.subr.bf16.mxu0 0
  %1143 = vmatpush1.bf16.msra.mxu0 %v1114
  %1144 = vmatprep.subr.bf16.mxu0 0
  %1145 = vmatpush1.bf16.msra.mxu0 %v1115
  %1146 = vmatprep.subr.bf16.mxu0 0
  %1147 = vmatpush1.bf16.msra.mxu0 0
  %1148 = vmatprep.subr.bf16.mxu0 0
  %1149 = vmatpush1.bf16.msra.mxu0 0
  %1150 = vmatprep.subr.bf16.mxu0 0
  %1151 = vmatpush1.bf16.msra.mxu0 0
  %1152 = vmatprep.subr.bf16.mxu0 0
  %1153 = vmatpush1.bf16.msra.mxu0 0
  %1154 = vmatprep.subr.bf16.mxu0 0
  %1155 = vmatpush1.bf16.msra.mxu0 0
  %1156 = vmatprep.subr.bf16.mxu0 0
  %1157 = vmatpush1.bf16.msra.mxu0 0
  %1158 = vmatprep.subr.bf16.mxu0 0
  %1159 = vmatpush1.bf16.msra.mxu0 0
  %1160 = vmatprep.subr.bf16.mxu0 0
  %1161 = vmatpush1.bf16.msra.mxu0 0
  %1162 = vmatprep.subr.bf16.mxu0 0
  %1163 = vmatpush1.bf16.msra.mxu0 0
  %1164 = vmatprep.subr.bf16.mxu0 0
  %1165 = vmatpush1.bf16.msra.mxu0 0
  %1166 = vmatprep.subr.bf16.mxu0 0
  %1167 = vmatpush1.bf16.msra.mxu0 0
  %1168 = vmatprep.subr.bf16.mxu0 0
  %1169 = vmatpush1.bf16.msra.mxu0 0
  %1170 = vmatprep.subr.bf16.mxu0 0
  %1171 = vmatpush1.bf16.msra.mxu0 0
  %1172 = vmatprep.subr.bf16.mxu0 0
  %1173 = vmatpush1.bf16.msra.mxu0 0
  %1174 = vmatprep.mubr.bf16.mxu0 0
  %1175 = vmatmul.mubr.bf16.gmra.mrb[0].mxu0 %v1119
  %v1176 = vpop.f32.mrb[0].mxu0
  %v1177 = vadd.f32 %v1104, %v1176
  %v1178 = vpop.f32.mrb[0].mxu0
  %v1179 = vpop.f32.mrb[0].mxu0
  %v1180 = vadd.f32 %v1104, %v1179
  %v1181 = vpop.f32.mrb[0].mxu0
  %1182 = vmatprep.mubr.bf16.mxu0 0
  %1183 = vmatmul.mubr.bf16.gmra.mrb[0].mxu0 %v1122
  %v1184 = vpop.f32.mrb[0].mxu0
  %v1185 = vadd.f32 %v1104, %v1184
  %v1186 = vpop.f32.mrb[0].mxu0
  %v1187 = vpop.f32.mrb[0].mxu0
  %v1188 = vadd.f32 %v1104, %v1187
  %v1189 = vpop.f32.mrb[0].mxu0
  %1190 = vmatprep.mubr.bf16.mxu0 0
  %1191 = vmatmul.mubr.bf16.gmra.mrb[0].mxu0 %v1125
  %v1192 = vpop.f32.mrb[0].mxu0
  %v1193 = vadd.f32 %v1104, %v1192
  %v1194 = vpop.f32.mrb[0].mxu0
  %v1195 = vpop.f32.mrb[0].mxu0
  %v1196 = vadd.f32 %v1104, %v1195
  %v1197 = vpop.f32.mrb[0].mxu0
  %1198 = vmatprep.mubr.bf16.mxu0 0
  %1199 = vmatmul.mubr.bf16.gmra.mrb[0].mxu0 %v1128
  %v1200 = vpop.f32.mrb[0].mxu0
  %v1201 = vadd.f32 %v1104, %v1200
  %v1202 = vpop.f32.mrb[0].mxu0
  %v1203 = vpop.f32.mrb[0].mxu0
  %v1204 = vadd.f32 %v1104, %v1203
  %v1205 = vpop.f32.mrb[0].mxu0
  %1206 = vmatprep.mubr.bf16.mxu0 0
  %1207 = vmatmul.mubr.bf16.gmra.mrb[0].mxu0 %v1131
  %v1208 = vpop.f32.mrb[0].mxu0
  %v1209 = vadd.f32 %v1104, %v1208
  %v1210 = vpop.f32.mrb[0].mxu0
  %v1211 = vpop.f32.mrb[0].mxu0
  %v1212 = vadd.f32 %v1104, %v1211
  %v1213 = vpop.f32.mrb[0].mxu0
  %1214 = vmatprep.mubr.bf16.mxu0 0
  %1215 = vmatmul.mubr.bf16.gmra.mrb[0].mxu0 %v1134
  %v1216 = vpop.f32.mrb[0].mxu0
  %v1217 = vadd.f32 %v1104, %v1216
  %v1218 = vpop.f32.mrb[0].mxu0
  %v1219 = vpop.f32.mrb[0].mxu0
  %v1220 = vadd.f32 %v1104, %v1219
  %v1221 = vpop.f32.mrb[0].mxu0
  %1222 = vmatprep.mubr.bf16.mxu0 0
  %1223 = vmatmul.mubr.bf16.gmra.mrb[0].mxu0 %v1137
  %v1224 = vpop.f32.mrb[0].mxu0
  %v1225 = vadd.f32 %v1104, %v1224
  %v1226 = vpop.f32.mrb[0].mxu0
  %v1227 = vpop.f32.mrb[0].mxu0
  %v1228 = vadd.f32 %v1104, %v1227
  %v1229 = vpop.f32.mrb[0].mxu0
  %1230 = vmatprep.mubr.bf16.mxu0 0
  %1231 = vmatmul.mubr.bf16.gmra.mrb[0].mxu0 %v1140
  %v1232 = vpop.f32.mrb[0].mxu0
  %v1233 = vadd.f32 %v1104, %v1232
  %v1234 = vpop.f32.mrb[0].mxu0
  %v1235 = vpop.f32.mrb[0].mxu0
  %v1236 = vadd.f32 %v1104, %v1235
  %v1237 = vpop.f32.mrb[0].mxu0
  %1238 = vdwg.mxu0
  %s1239 = scalar_lea.vmem [#allocation2], 16
  %v1240 = vld [vmem:[%s1239] sm:$0xff]
  %v1241 = vld [vmem:[%s1239 + $0x8] sm:$0xff]
  %s1242 = scalar_lea.vmem [#allocation3], 16
  %v1243 = vld [vmem:[%s1242] sm:$0xff]
  %v1244 = vld [vmem:[%s1242 + $0x8] sm:$0xff]
  %v1245 = vpack.c.bf16 %v1241, %v1240
  %v1250 = vunpack.c.l.b16 %v1094
  %v1251 = vunpack.c.l.b16 %v1095
  %v1252 = vunpack.c.l.b16 %v1096
  %v1253 = vunpack.c.l.b16 %v1097
  %v1254 = vpack.c.b16 %v1251, %v1250
  %v1255 = vpack.c.b16 %v1253, %v1252
  %v1259 = vsel %vm251, %v1245, 0
  %1261 = vmatprep.subr.bf16.mxu0 0
  %1262 = vmatpush1.bf16.msra.mxu0 %v1254
  %1263 = vmatprep.subr.bf16.mxu0 0
  %1264 = vmatpush1.bf16.msra.mxu0 %v1255
  %1265 = vmatprep.subr.bf16.mxu0 0
  %1266 = vmatpush1.bf16.msra.mxu0 0
  %1267 = vmatprep.subr.bf16.mxu0 0
  %1268 = vmatpush1.bf16.msra.mxu0 0
  %1269 = vmatprep.subr.bf16.mxu0 0
  %1270 = vmatpush1.bf16.msra.mxu0 0
  %1271 = vmatprep.subr.bf16.mxu0 0
  %1272 = vmatpush1.bf16.msra.mxu0 0
  %1273 = vmatprep.subr.bf16.mxu0 0
  %1274 = vmatpush1.bf16.msra.mxu0 0
  %1275 = vmatprep.subr.bf16.mxu0 0
  %1276 = vmatpush1.bf16.msra.mxu0 0
  %1277 = vmatprep.subr.bf16.mxu0 0
  %1278 = vmatpush1.bf16.msra.mxu0 0
  %1279 = vmatprep.subr.bf16.mxu0 0
  %1280 = vmatpush1.bf16.msra.mxu0 0
  %1281 = vmatprep.subr.bf16.mxu0 0
  %1282 = vmatpush1.bf16.msra.mxu0 0
  %1283 = vmatprep.subr.bf16.mxu0 0
  %1284 = vmatpush1.bf16.msra.mxu0 0
  %1285 = vmatprep.subr.bf16.mxu0 0
  %1286 = vmatpush1.bf16.msra.mxu0 0
  %1287 = vmatprep.subr.bf16.mxu0 0
  %1288 = vmatpush1.bf16.msra.mxu0 0
  %1289 = vmatprep.subr.bf16.mxu0 0
  %1290 = vmatpush1.bf16.msra.mxu0 0
  %1291 = vmatprep.subr.bf16.mxu0 0
  %1292 = vmatpush1.bf16.msra.mxu0 0
  %1293 = vmatprep.mubr.bf16.mxu0 0
  %1294 = vmatmul.mubr.bf16.gmra.mrb[0].mxu0 %v1259
  %v1295 = vpop.f32.mrb[0].mxu0
  %v1296 = vadd.f32 0.0, %v1295
  %v1297 = vpop.f32.mrb[0].mxu0
  %v1298 = vpop.f32.mrb[0].mxu0
  %v1299 = vadd.f32 0.0, %v1298
  %v1300 = vpop.f32.mrb[0].mxu0
  %1301 = vdwg.mxu0
  %v1302 = vadd.f32 %v1177, %v1296
  %v1303 = vadd.f32 %v1180, %v1299
  %v1304 = vxor.u32 %v1302, 2147483648
  %v1305 = vxor.u32 %v1303, 2147483648
  %v1306 = vmul.f32 %v1304, 1.442695
  %v1307 = vpow.pop %v1306
  %v1308 = vmul.f32 %v1305, 1.442695
  %v1309 = vpow.pop %v1308
  %v1310 = vadd.f32 %v1307, 1.0
  %v1311 = vadd.f32 %v1309, 1.0
  %v1312 = vrcp.pop %v1310
  %v1313 = vmul.f32 1.0, %v1312
  %v1314 = vrcp.pop %v1311
  %v1315 = vmul.f32 1.0, %v1314
  %v1316 = vtanh.pop %v1302
  %v1317 = vtanh.pop %v1303
  %1320 = vrot.lane.b32.xlu0 %v1243, 32
  %v1321 = vpop.permute.xlu0 %1320
  %1322 = vrot.lane.b32.xlu0 %v1244, 32
  %v1323 = vpop.permute.xlu0 %1322
  %v1326 = vmul.f32 %v1313, %v1321
  %v1327 = vmul.f32 %v1315, %v1323
  %1330 = vrot.lane.b32.xlu0 %v1316, 32
  %v1331 = vpop.permute.xlu0 %1330
  %1332 = vrot.lane.b32.xlu0 %v1317, 32
  %v1333 = vpop.permute.xlu0 %1332
  %v1336 = vmul.f32 %v1313, %v1331
  %v1337 = vmul.f32 %v1315, %v1333
  %1340 = vrot.lane.b32.xlu0 %v1336, 32
  %v1341 = vpop.permute.xlu0 %1340
  %1342 = vrot.lane.b32.xlu0 %v1337, 32
  %v1343 = vpop.permute.xlu0 %1342
  %v1346 = vadd.f32 %v1326, %v1341
  %v1347 = vadd.f32 %v1327, %v1343
  %v1348 = vtanh.pop %v1346
  %v1349 = vtanh.pop %v1347
  %1352 = vrot.lane.b32.xlu0 %v1348, 32
  %v1353 = vpop.permute.xlu0 %1352
  %1354 = vrot.lane.b32.xlu0 %v1349, 32
  %v1355 = vpop.permute.xlu0 %1354
  %v1358 = vmul.f32 %v1313, %v1353
  %v1359 = vmul.f32 %v1315, %v1355
  %v1360 = vpack.c.bf16 %v1359, %v1358
  %1362 = vrot.lane.b32.xlu0 %v1360, 64
  %v1363 = vpop.permute.xlu0 %1362
  %v1365 = vsel %vm251, %v1363, 0
  %1367 = vmatprep.subr.bf16.mxu0 0
  %1368 = vmatpush1.bf16.msra.mxu0 %v1254
  %1369 = vmatprep.subr.bf16.mxu0 0
  %1370 = vmatpush1.bf16.msra.mxu0 %v1255
  %1371 = vmatprep.subr.bf16.mxu0 0
  %1372 = vmatpush1.bf16.msra.mxu0 0
  %1373 = vmatprep.subr.bf16.mxu0 0
  %1374 = vmatpush1.bf16.msra.mxu0 0
  %1375 = vmatprep.subr.bf16.mxu0 0
  %1376 = vmatpush1.bf16.msra.mxu0 0
  %1377 = vmatprep.subr.bf16.mxu0 0
  %1378 = vmatpush1.bf16.msra.mxu0 0
  %1379 = vmatprep.subr.bf16.mxu0 0
  %1380 = vmatpush1.bf16.msra.mxu0 0
  %1381 = vmatprep.subr.bf16.mxu0 0
  %1382 = vmatpush1.bf16.msra.mxu0 0
  %1383 = vmatprep.subr.bf16.mxu0 0
  %1384 = vmatpush1.bf16.msra.mxu0 0
  %1385 = vmatprep.subr.bf16.mxu0 0
  %1386 = vmatpush1.bf16.msra.mxu0 0
  %1387 = vmatprep.subr.bf16.mxu0 0
  %1388 = vmatpush1.bf16.msra.mxu0 0
  %1389 = vmatprep.subr.bf16.mxu0 0
  %1390 = vmatpush1.bf16.msra.mxu0 0
  %1391 = vmatprep.subr.bf16.mxu0 0
  %1392 = vmatpush1.bf16.msra.mxu0 0
  %1393 = vmatprep.subr.bf16.mxu0 0
  %1394 = vmatpush1.bf16.msra.mxu0 0
  %1395 = vmatprep.subr.bf16.mxu0 0
  %1396 = vmatpush1.bf16.msra.mxu0 0
  %1397 = vmatprep.subr.bf16.mxu0 0
  %1398 = vmatpush1.bf16.msra.mxu0 0
  %1399 = vmatprep.mubr.bf16.mxu0 0
  %1400 = vmatmul.mubr.bf16.gmra.mrb[0].mxu0 %v1365
  %v1401 = vpop.f32.mrb[0].mxu0
  %v1402 = vadd.f32 0.0, %v1401
  %v1403 = vpop.f32.mrb[0].mxu0
  %v1404 = vpop.f32.mrb[0].mxu0
  %v1405 = vadd.f32 0.0, %v1404
  %v1406 = vpop.f32.mrb[0].mxu0
  %1407 = vdwg.mxu0
  %v1408 = vadd.f32 %v1185, %v1402
  %v1409 = vadd.f32 %v1188, %v1405
  %v1410 = vxor.u32 %v1408, 2147483648
  %v1411 = vxor.u32 %v1409, 2147483648
  %v1412 = vmul.f32 %v1410, 1.442695
  %v1413 = vpow.pop %v1412
  %v1414 = vmul.f32 %v1411, 1.442695
  %v1415 = vpow.pop %v1414
  %v1416 = vadd.f32 %v1413, 1.0
  %v1417 = vadd.f32 %v1415, 1.0
  %v1418 = vrcp.pop %v1416
  %v1419 = vmul.f32 1.0, %v1418
  %v1420 = vrcp.pop %v1417
  %v1421 = vmul.f32 1.0, %v1420
  %v1422 = vtanh.pop %v1408
  %v1423 = vtanh.pop %v1409
  %v1424 = vmul.f32 %v1419, %v1346
  %v1425 = vmul.f32 %v1421, %v1347
  %1428 = vrot.lane.b32.xlu0 %v1422, 32
  %v1429 = vpop.permute.xlu0 %1428
  %1430 = vrot.lane.b32.xlu0 %v1423, 32
  %v1431 = vpop.permute.xlu0 %1430
  %v1434 = vmul.f32 %v1419, %v1429
  %v1435 = vmul.f32 %v1421, %v1431
  %1438 = vrot.lane.b32.xlu0 %v1434, 32
  %v1439 = vpop.permute.xlu0 %1438
  %1440 = vrot.lane.b32.xlu0 %v1435, 32
  %v1441 = vpop.permute.xlu0 %1440
  %v1444 = vadd.f32 %v1424, %v1439
  %v1445 = vadd.f32 %v1425, %v1441
  %v1446 = vtanh.pop %v1444
  %v1447 = vtanh.pop %v1445
  %1450 = vrot.lane.b32.xlu0 %v1446, 32
  %v1451 = vpop.permute.xlu0 %1450
  %1452 = vrot.lane.b32.xlu0 %v1447, 32
  %v1453 = vpop.permute.xlu0 %1452
  %v1456 = vmul.f32 %v1419, %v1451
  %v1457 = vmul.f32 %v1421, %v1453
  %v1458 = vpack.c.bf16 %v1457, %v1456
  %1460 = vrot.lane.b32.xlu0 %v1458, 64
  %v1461 = vpop.permute.xlu0 %1460
  %v1463 = vsel %vm251, %v1461, 0
  %1465 = vmatprep.subr.bf16.mxu0 0
  %1466 = vmatpush1.bf16.msra.mxu0 %v1254
  %1467 = vmatprep.subr.bf16.mxu0 0
  %1468 = vmatpush1.bf16.msra.mxu0 %v1255
  %1469 = vmatprep.subr.bf16.mxu0 0
  %1470 = vmatpush1.bf16.msra.mxu0 0
  %1471 = vmatprep.subr.bf16.mxu0 0
  %1472 = vmatpush1.bf16.msra.mxu0 0
  %1473 = vmatprep.subr.bf16.mxu0 0
  %1474 = vmatpush1.bf16.msra.mxu0 0
  %1475 = vmatprep.subr.bf16.mxu0 0
  %1476 = vmatpush1.bf16.msra.mxu0 0
  %1477 = vmatprep.subr.bf16.mxu0 0
  %1478 = vmatpush1.bf16.msra.mxu0 0
  %1479 = vmatprep.subr.bf16.mxu0 0
  %1480 = vmatpush1.bf16.msra.mxu0 0
  %1481 = vmatprep.subr.bf16.mxu0 0
  %1482 = vmatpush1.bf16.msra.mxu0 0
  %1483 = vmatprep.subr.bf16.mxu0 0
  %1484 = vmatpush1.bf16.msra.mxu0 0
  %1485 = vmatprep.subr.bf16.mxu0 0
  %1486 = vmatpush1.bf16.msra.mxu0 0
  %1487 = vmatprep.subr.bf16.mxu0 0
  %1488 = vmatpush1.bf16.msra.mxu0 0
  %1489 = vmatprep.subr.bf16.mxu0 0
  %1490 = vmatpush1.bf16.msra.mxu0 0
  %1491 = vmatprep.subr.bf16.mxu0 0
  %1492 = vmatpush1.bf16.msra.mxu0 0
  %1493 = vmatprep.subr.bf16.mxu0 0
  %1494 = vmatpush1.bf16.msra.mxu0 0
  %1495 = vmatprep.subr.bf16.mxu0 0
  %1496 = vmatpush1.bf16.msra.mxu0 0
  %1497 = vmatprep.mubr.bf16.mxu0 0
  %1498 = vmatmul.mubr.bf16.gmra.mrb[0].mxu0 %v1463
  %v1499 = vpop.f32.mrb[0].mxu0
  %v1500 = vadd.f32 0.0, %v1499
  %v1501 = vpop.f32.mrb[0].mxu0
  %v1502 = vpop.f32.mrb[0].mxu0
  %v1503 = vadd.f32 0.0, %v1502
  %v1504 = vpop.f32.mrb[0].mxu0
  %1505 = vdwg.mxu0
  %v1506 = vadd.f32 %v1193, %v1500
  %v1507 = vadd.f32 %v1196, %v1503
  %v1508 = vxor.u32 %v1506, 2147483648
  %v1509 = vxor.u32 %v1507, 2147483648
  %v1510 = vmul.f32 %v1508, 1.442695
  %v1511 = vpow.pop %v1510
  %v1512 = vmul.f32 %v1509, 1.442695
  %v1513 = vpow.pop %v1512
  %v1514 = vadd.f32 %v1511, 1.0
  %v1515 = vadd.f32 %v1513, 1.0
  %v1516 = vrcp.pop %v1514
  %v1517 = vmul.f32 1.0, %v1516
  %v1518 = vrcp.pop %v1515
  %v1519 = vmul.f32 1.0, %v1518
  %v1520 = vtanh.pop %v1506
  %v1521 = vtanh.pop %v1507
  %v1522 = vmul.f32 %v1517, %v1444
  %v1523 = vmul.f32 %v1519, %v1445
  %1526 = vrot.lane.b32.xlu0 %v1520, 32
  %v1527 = vpop.permute.xlu0 %1526
  %1528 = vrot.lane.b32.xlu0 %v1521, 32
  %v1529 = vpop.permute.xlu0 %1528
  %v1532 = vmul.f32 %v1517, %v1527
  %v1533 = vmul.f32 %v1519, %v1529
  %1536 = vrot.lane.b32.xlu0 %v1532, 32
  %v1537 = vpop.permute.xlu0 %1536
  %1538 = vrot.lane.b32.xlu0 %v1533, 32
  %v1539 = vpop.permute.xlu0 %1538
  %v1542 = vadd.f32 %v1522, %v1537
  %v1543 = vadd.f32 %v1523, %v1539
  %v1544 = vtanh.pop %v1542
  %v1545 = vtanh.pop %v1543
  %1548 = vrot.lane.b32.xlu0 %v1544, 32
  %v1549 = vpop.permute.xlu0 %1548
  %1550 = vrot.lane.b32.xlu0 %v1545, 32
  %v1551 = vpop.permute.xlu0 %1550
  %v1554 = vmul.f32 %v1517, %v1549
  %v1555 = vmul.f32 %v1519, %v1551
  %v1556 = vpack.c.bf16 %v1555, %v1554
  %1558 = vrot.lane.b32.xlu0 %v1556, 64
  %v1559 = vpop.permute.xlu0 %1558
  %v1561 = vsel %vm251, %v1559, 0
  %1563 = vmatprep.subr.bf16.mxu0 0
  %1564 = vmatpush1.bf16.msra.mxu0 %v1254
  %1565 = vmatprep.subr.bf16.mxu0 0
  %1566 = vmatpush1.bf16.msra.mxu0 %v1255
  %1567 = vmatprep.subr.bf16.mxu0 0
  %1568 = vmatpush1.bf16.msra.mxu0 0
  %1569 = vmatprep.subr.bf16.mxu0 0
  %1570 = vmatpush1.bf16.msra.mxu0 0
  %1571 = vmatprep.subr.bf16.mxu0 0
  %1572 = vmatpush1.bf16.msra.mxu0 0
  %1573 = vmatprep.subr.bf16.mxu0 0
  %1574 = vmatpush1.bf16.msra.mxu0 0
  %1575 = vmatprep.subr.bf16.mxu0 0
  %1576 = vmatpush1.bf16.msra.mxu0 0
  %1577 = vmatprep.subr.bf16.mxu0 0
  %1578 = vmatpush1.bf16.msra.mxu0 0
  %1579 = vmatprep.subr.bf16.mxu0 0
  %1580 = vmatpush1.bf16.msra.mxu0 0
  %1581 = vmatprep.subr.bf16.mxu0 0
  %1582 = vmatpush1.bf16.msra.mxu0 0
  %1583 = vmatprep.subr.bf16.mxu0 0
  %1584 = vmatpush1.bf16.msra.mxu0 0
  %1585 = vmatprep.subr.bf16.mxu0 0
  %1586 = vmatpush1.bf16.msra.mxu0 0
  %1587 = vmatprep.subr.bf16.mxu0 0
  %1588 = vmatpush1.bf16.msra.mxu0 0
  %1589 = vmatprep.subr.bf16.mxu0 0
  %1590 = vmatpush1.bf16.msra.mxu0 0
  %1591 = vmatprep.subr.bf16.mxu0 0
  %1592 = vmatpush1.bf16.msra.mxu0 0
  %1593 = vmatprep.subr.bf16.mxu0 0
  %1594 = vmatpush1.bf16.msra.mxu0 0
  %1595 = vmatprep.mubr.bf16.mxu0 0
  %1596 = vmatmul.mubr.bf16.gmra.mrb[0].mxu0 %v1561
  %v1597 = vpop.f32.mrb[0].mxu0
  %v1598 = vadd.f32 0.0, %v1597
  %v1599 = vpop.f32.mrb[0].mxu0
  %v1600 = vpop.f32.mrb[0].mxu0
  %v1601 = vadd.f32 0.0, %v1600
  %v1602 = vpop.f32.mrb[0].mxu0
  %1603 = vdwg.mxu0
  %v1604 = vadd.f32 %v1201, %v1598
  %v1605 = vadd.f32 %v1204, %v1601
  %v1606 = vxor.u32 %v1604, 2147483648
  %v1607 = vxor.u32 %v1605, 2147483648
  %v1608 = vmul.f32 %v1606, 1.442695
  %v1609 = vpow.pop %v1608
  %v1610 = vmul.f32 %v1607, 1.442695
  %v1611 = vpow.pop %v1610
  %v1612 = vadd.f32 %v1609, 1.0
  %v1613 = vadd.f32 %v1611, 1.0
  %v1614 = vrcp.pop %v1612
  %v1615 = vmul.f32 1.0, %v1614
  %v1616 = vrcp.pop %v1613
  %v1617 = vmul.f32 1.0, %v1616
  %v1618 = vtanh.pop %v1604
  %v1619 = vtanh.pop %v1605
  %v1620 = vmul.f32 %v1615, %v1542
  %v1621 = vmul.f32 %v1617, %v1543
  %1624 = vrot.lane.b32.xlu0 %v1618, 32
  %v1625 = vpop.permute.xlu0 %1624
  %1626 = vrot.lane.b32.xlu0 %v1619, 32
  %v1627 = vpop.permute.xlu0 %1626
  %v1630 = vmul.f32 %v1615, %v1625
  %v1631 = vmul.f32 %v1617, %v1627
  %1634 = vrot.lane.b32.xlu0 %v1630, 32
  %v1635 = vpop.permute.xlu0 %1634
  %1636 = vrot.lane.b32.xlu0 %v1631, 32
  %v1637 = vpop.permute.xlu0 %1636
  %v1640 = vadd.f32 %v1620, %v1635
  %v1641 = vadd.f32 %v1621, %v1637
  %v1642 = vtanh.pop %v1640
  %v1643 = vtanh.pop %v1641
  %1646 = vrot.lane.b32.xlu0 %v1642, 32
  %v1647 = vpop.permute.xlu0 %1646
  %1648 = vrot.lane.b32.xlu0 %v1643, 32
  %v1649 = vpop.permute.xlu0 %1648
  %v1652 = vmul.f32 %v1615, %v1647
  %v1653 = vmul.f32 %v1617, %v1649
  %v1654 = vpack.c.bf16 %v1653, %v1652
  %1656 = vrot.lane.b32.xlu0 %v1654, 64
  %v1657 = vpop.permute.xlu0 %1656
  %v1659 = vsel %vm251, %v1657, 0
  %1661 = vmatprep.subr.bf16.mxu0 0
  %1662 = vmatpush1.bf16.msra.mxu0 %v1254
  %1663 = vmatprep.subr.bf16.mxu0 0
  %1664 = vmatpush1.bf16.msra.mxu0 %v1255
  %1665 = vmatprep.subr.bf16.mxu0 0
  %1666 = vmatpush1.bf16.msra.mxu0 0
  %1667 = vmatprep.subr.bf16.mxu0 0
  %1668 = vmatpush1.bf16.msra.mxu0 0
  %1669 = vmatprep.subr.bf16.mxu0 0
  %1670 = vmatpush1.bf16.msra.mxu0 0
  %1671 = vmatprep.subr.bf16.mxu0 0
  %1672 = vmatpush1.bf16.msra.mxu0 0
  %1673 = vmatprep.subr.bf16.mxu0 0
  %1674 = vmatpush1.bf16.msra.mxu0 0
  %1675 = vmatprep.subr.bf16.mxu0 0
  %1676 = vmatpush1.bf16.msra.mxu0 0
  %1677 = vmatprep.subr.bf16.mxu0 0
  %1678 = vmatpush1.bf16.msra.mxu0 0
  %1679 = vmatprep.subr.bf16.mxu0 0
  %1680 = vmatpush1.bf16.msra.mxu0 0
  %1681 = vmatprep.subr.bf16.mxu0 0
  %1682 = vmatpush1.bf16.msra.mxu0 0
  %1683 = vmatprep.subr.bf16.mxu0 0
  %1684 = vmatpush1.bf16.msra.mxu0 0
  %1685 = vmatprep.subr.bf16.mxu0 0
  %1686 = vmatpush1.bf16.msra.mxu0 0
  %1687 = vmatprep.subr.bf16.mxu0 0
  %1688 = vmatpush1.bf16.msra.mxu0 0
  %1689 = vmatprep.subr.bf16.mxu0 0
  %1690 = vmatpush1.bf16.msra.mxu0 0
  %1691 = vmatprep.subr.bf16.mxu0 0
  %1692 = vmatpush1.bf16.msra.mxu0 0
  %1693 = vmatprep.mubr.bf16.mxu0 0
  %1694 = vmatmul.mubr.bf16.gmra.mrb[0].mxu0 %v1659
  %v1695 = vpop.f32.mrb[0].mxu0
  %v1696 = vadd.f32 0.0, %v1695
  %v1697 = vpop.f32.mrb[0].mxu0
  %v1698 = vpop.f32.mrb[0].mxu0
  %v1699 = vadd.f32 0.0, %v1698
  %v1700 = vpop.f32.mrb[0].mxu0
  %1701 = vdwg.mxu0
  %v1702 = vadd.f32 %v1209, %v1696
  %v1703 = vadd.f32 %v1212, %v1699
  %v1704 = vxor.u32 %v1702, 2147483648
  %v1705 = vxor.u32 %v1703, 2147483648
  %v1706 = vmul.f32 %v1704, 1.442695
  %v1707 = vpow.pop %v1706
  %v1708 = vmul.f32 %v1705, 1.442695
  %v1709 = vpow.pop %v1708
  %v1710 = vadd.f32 %v1707, 1.0
  %v1711 = vadd.f32 %v1709, 1.0
  %v1712 = vrcp.pop %v1710
  %v1713 = vmul.f32 1.0, %v1712
  %v1714 = vrcp.pop %v1711
  %v1715 = vmul.f32 1.0, %v1714
  %v1716 = vtanh.pop %v1702
  %v1717 = vtanh.pop %v1703
  %v1718 = vmul.f32 %v1713, %v1640
  %v1719 = vmul.f32 %v1715, %v1641
  %1722 = vrot.lane.b32.xlu0 %v1716, 32
  %v1723 = vpop.permute.xlu0 %1722
  %1724 = vrot.lane.b32.xlu0 %v1717, 32
  %v1725 = vpop.permute.xlu0 %1724
  %v1728 = vmul.f32 %v1713, %v1723
  %v1729 = vmul.f32 %v1715, %v1725
  %1732 = vrot.lane.b32.xlu0 %v1728, 32
  %v1733 = vpop.permute.xlu0 %1732
  %1734 = vrot.lane.b32.xlu0 %v1729, 32
  %v1735 = vpop.permute.xlu0 %1734
  %v1738 = vadd.f32 %v1718, %v1733
  %v1739 = vadd.f32 %v1719, %v1735
  %v1740 = vtanh.pop %v1738
  %v1741 = vtanh.pop %v1739
  %1744 = vrot.lane.b32.xlu0 %v1740, 32
  %v1745 = vpop.permute.xlu0 %1744
  %1746 = vrot.lane.b32.xlu0 %v1741, 32
  %v1747 = vpop.permute.xlu0 %1746
  %v1750 = vmul.f32 %v1713, %v1745
  %v1751 = vmul.f32 %v1715, %v1747
  %v1752 = vpack.c.bf16 %v1751, %v1750
  %1754 = vrot.lane.b32.xlu0 %v1752, 64
  %v1755 = vpop.permute.xlu0 %1754
  %v1757 = vsel %vm251, %v1755, 0
  %1759 = vmatprep.subr.bf16.mxu0 0
  %1760 = vmatpush1.bf16.msra.mxu0 %v1254
  %1761 = vmatprep.subr.bf16.mxu0 0
  %1762 = vmatpush1.bf16.msra.mxu0 %v1255
  %1763 = vmatprep.subr.bf16.mxu0 0
  %1764 = vmatpush1.bf16.msra.mxu0 0
  %1765 = vmatprep.subr.bf16.mxu0 0
  %1766 = vmatpush1.bf16.msra.mxu0 0
  %1767 = vmatprep.subr.bf16.mxu0 0
  %1768 = vmatpush1.bf16.msra.mxu0 0
  %1769 = vmatprep.subr.bf16.mxu0 0
  %1770 = vmatpush1.bf16.msra.mxu0 0
  %1771 = vmatprep.subr.bf16.mxu0 0
  %1772 = vmatpush1.bf16.msra.mxu0 0
  %1773 = vmatprep.subr.bf16.mxu0 0
  %1774 = vmatpush1.bf16.msra.mxu0 0
  %1775 = vmatprep.subr.bf16.mxu0 0
  %1776 = vmatpush1.bf16.msra.mxu0 0
  %1777 = vmatprep.subr.bf16.mxu0 0
  %1778 = vmatpush1.bf16.msra.mxu0 0
  %1779 = vmatprep.subr.bf16.mxu0 0
  %1780 = vmatpush1.bf16.msra.mxu0 0
  %1781 = vmatprep.subr.bf16.mxu0 0
  %1782 = vmatpush1.bf16.msra.mxu0 0
  %1783 = vmatprep.subr.bf16.mxu0 0
  %1784 = vmatpush1.bf16.msra.mxu0 0
  %1785 = vmatprep.subr.bf16.mxu0 0
  %1786 = vmatpush1.bf16.msra.mxu0 0
  %1787 = vmatprep.subr.bf16.mxu0 0
  %1788 = vmatpush1.bf16.msra.mxu0 0
  %1789 = vmatprep.subr.bf16.mxu0 0
  %1790 = vmatpush1.bf16.msra.mxu0 0
  %1791 = vmatprep.mubr.bf16.mxu0 0
  %1792 = vmatmul.mubr.bf16.gmra.mrb[0].mxu0 %v1757
  %v1793 = vpop.f32.mrb[0].mxu0
  %v1794 = vadd.f32 0.0, %v1793
  %v1795 = vpop.f32.mrb[0].mxu0
  %v1796 = vpop.f32.mrb[0].mxu0
  %v1797 = vadd.f32 0.0, %v1796
  %v1798 = vpop.f32.mrb[0].mxu0
  %1799 = vdwg.mxu0
  %v1800 = vadd.f32 %v1217, %v1794
  %v1801 = vadd.f32 %v1220, %v1797
  %v1802 = vxor.u32 %v1800, 2147483648
  %v1803 = vxor.u32 %v1801, 2147483648
  %v1804 = vmul.f32 %v1802, 1.442695
  %v1805 = vpow.pop %v1804
  %v1806 = vmul.f32 %v1803, 1.442695
  %v1807 = vpow.pop %v1806
  %v1808 = vadd.f32 %v1805, 1.0
  %v1809 = vadd.f32 %v1807, 1.0
  %v1810 = vrcp.pop %v1808
  %v1811 = vmul.f32 1.0, %v1810
  %v1812 = vrcp.pop %v1809
  %v1813 = vmul.f32 1.0, %v1812
  %v1814 = vtanh.pop %v1800
  %v1815 = vtanh.pop %v1801
  %v1816 = vmul.f32 %v1811, %v1738
  %v1817 = vmul.f32 %v1813, %v1739
  %1820 = vrot.lane.b32.xlu0 %v1814, 32
  %v1821 = vpop.permute.xlu0 %1820
  %1822 = vrot.lane.b32.xlu0 %v1815, 32
  %v1823 = vpop.permute.xlu0 %1822
  %v1826 = vmul.f32 %v1811, %v1821
  %v1827 = vmul.f32 %v1813, %v1823
  %1830 = vrot.lane.b32.xlu0 %v1826, 32
  %v1831 = vpop.permute.xlu0 %1830
  %1832 = vrot.lane.b32.xlu0 %v1827, 32
  %v1833 = vpop.permute.xlu0 %1832
  %v1836 = vadd.f32 %v1816, %v1831
  %v1837 = vadd.f32 %v1817, %v1833
  %v1838 = vtanh.pop %v1836
  %v1839 = vtanh.pop %v1837
  %1842 = vrot.lane.b32.xlu0 %v1838, 32
  %v1843 = vpop.permute.xlu0 %1842
  %1844 = vrot.lane.b32.xlu0 %v1839, 32
  %v1845 = vpop.permute.xlu0 %1844
  %v1848 = vmul.f32 %v1811, %v1843
  %v1849 = vmul.f32 %v1813, %v1845
  %v1850 = vpack.c.bf16 %v1849, %v1848
  %1852 = vrot.lane.b32.xlu0 %v1850, 64
  %v1853 = vpop.permute.xlu0 %1852
  %v1855 = vsel %vm251, %v1853, 0
  %1857 = vmatprep.subr.bf16.mxu0 0
  %1858 = vmatpush1.bf16.msra.mxu0 %v1254
  %1859 = vmatprep.subr.bf16.mxu0 0
  %1860 = vmatpush1.bf16.msra.mxu0 %v1255
  %1861 = vmatprep.subr.bf16.mxu0 0
  %1862 = vmatpush1.bf16.msra.mxu0 0
  %1863 = vmatprep.subr.bf16.mxu0 0
  %1864 = vmatpush1.bf16.msra.mxu0 0
  %1865 = vmatprep.subr.bf16.mxu0 0
  %1866 = vmatpush1.bf16.msra.mxu0 0
  %1867 = vmatprep.subr.bf16.mxu0 0
  %1868 = vmatpush1.bf16.msra.mxu0 0
  %1869 = vmatprep.subr.bf16.mxu0 0
  %1870 = vmatpush1.bf16.msra.mxu0 0
  %1871 = vmatprep.subr.bf16.mxu0 0
  %1872 = vmatpush1.bf16.msra.mxu0 0
  %1873 = vmatprep.subr.bf16.mxu0 0
  %1874 = vmatpush1.bf16.msra.mxu0 0
  %1875 = vmatprep.subr.bf16.mxu0 0
  %1876 = vmatpush1.bf16.msra.mxu0 0
  %1877 = vmatprep.subr.bf16.mxu0 0
  %1878 = vmatpush1.bf16.msra.mxu0 0
  %1879 = vmatprep.subr.bf16.mxu0 0
  %1880 = vmatpush1.bf16.msra.mxu0 0
  %1881 = vmatprep.subr.bf16.mxu0 0
  %1882 = vmatpush1.bf16.msra.mxu0 0
  %1883 = vmatprep.subr.bf16.mxu0 0
  %1884 = vmatpush1.bf16.msra.mxu0 0
  %1885 = vmatprep.subr.bf16.mxu0 0
  %1886 = vmatpush1.bf16.msra.mxu0 0
  %1887 = vmatprep.subr.bf16.mxu0 0
  %1888 = vmatpush1.bf16.msra.mxu0 0
  %1889 = vmatprep.mubr.bf16.mxu0 0
  %1890 = vmatmul.mubr.bf16.gmra.mrb[0].mxu0 %v1855
  %v1891 = vpop.f32.mrb[0].mxu0
  %v1892 = vadd.f32 0.0, %v1891
  %v1893 = vpop.f32.mrb[0].mxu0
  %v1894 = vpop.f32.mrb[0].mxu0
  %v1895 = vadd.f32 0.0, %v1894
  %v1896 = vpop.f32.mrb[0].mxu0
  %1897 = vdwg.mxu0
  %v1898 = vadd.f32 %v1225, %v1892
  %v1899 = vadd.f32 %v1228, %v1895
  %v1900 = vxor.u32 %v1898, 2147483648
  %v1901 = vxor.u32 %v1899, 2147483648
  %v1902 = vmul.f32 %v1900, 1.442695
  %v1903 = vpow.pop %v1902
  %v1904 = vmul.f32 %v1901, 1.442695
  %v1905 = vpow.pop %v1904
  %v1906 = vadd.f32 %v1903, 1.0
  %v1907 = vadd.f32 %v1905, 1.0
  %v1908 = vrcp.pop %v1906
  %v1909 = vmul.f32 1.0, %v1908
  %v1910 = vrcp.pop %v1907
  %v1911 = vmul.f32 1.0, %v1910
  %v1912 = vtanh.pop %v1898
  %v1913 = vtanh.pop %v1899
  %v1914 = vmul.f32 %v1909, %v1836
  %v1915 = vmul.f32 %v1911, %v1837
  %1918 = vrot.lane.b32.xlu0 %v1912, 32
  %v1919 = vpop.permute.xlu0 %1918
  %1920 = vrot.lane.b32.xlu0 %v1913, 32
  %v1921 = vpop.permute.xlu0 %1920
  %v1924 = vmul.f32 %v1909, %v1919
  %v1925 = vmul.f32 %v1911, %v1921
  %1928 = vrot.lane.b32.xlu0 %v1924, 32
  %v1929 = vpop.permute.xlu0 %1928
  %1930 = vrot.lane.b32.xlu0 %v1925, 32
  %v1931 = vpop.permute.xlu0 %1930
  %v1934 = vadd.f32 %v1914, %v1929
  %v1935 = vadd.f32 %v1915, %v1931
  %v1936 = vtanh.pop %v1934
  %v1937 = vtanh.pop %v1935
  %1940 = vrot.lane.b32.xlu0 %v1936, 32
  %v1941 = vpop.permute.xlu0 %1940
  %1942 = vrot.lane.b32.xlu0 %v1937, 32
  %v1943 = vpop.permute.xlu0 %1942
  %v1946 = vmul.f32 %v1909, %v1941
  %v1947 = vmul.f32 %v1911, %v1943
  %v1948 = vpack.c.bf16 %v1947, %v1946
  %1950 = vrot.lane.b32.xlu0 %v1948, 64
  %v1951 = vpop.permute.xlu0 %1950
  %v1953 = vsel %vm251, %v1951, 0
  %1955 = vmatprep.subr.bf16.mxu0 0
  %1956 = vmatpush1.bf16.msra.mxu0 %v1254
  %1957 = vmatprep.subr.bf16.mxu0 0
  %1958 = vmatpush1.bf16.msra.mxu0 %v1255
  %1959 = vmatprep.subr.bf16.mxu0 0
  %1960 = vmatpush1.bf16.msra.mxu0 0
  %1961 = vmatprep.subr.bf16.mxu0 0
  %1962 = vmatpush1.bf16.msra.mxu0 0
  %1963 = vmatprep.subr.bf16.mxu0 0
  %1964 = vmatpush1.bf16.msra.mxu0 0
  %1965 = vmatprep.subr.bf16.mxu0 0
  %1966 = vmatpush1.bf16.msra.mxu0 0
  %1967 = vmatprep.subr.bf16.mxu0 0
  %1968 = vmatpush1.bf16.msra.mxu0 0
  %1969 = vmatprep.subr.bf16.mxu0 0
  %1970 = vmatpush1.bf16.msra.mxu0 0
  %1971 = vmatprep.subr.bf16.mxu0 0
  %1972 = vmatpush1.bf16.msra.mxu0 0
  %1973 = vmatprep.subr.bf16.mxu0 0
  %1974 = vmatpush1.bf16.msra.mxu0 0
  %1975 = vmatprep.subr.bf16.mxu0 0
  %1976 = vmatpush1.bf16.msra.mxu0 0
  %1977 = vmatprep.subr.bf16.mxu0 0
  %1978 = vmatpush1.bf16.msra.mxu0 0
  %1979 = vmatprep.subr.bf16.mxu0 0
  %1980 = vmatpush1.bf16.msra.mxu0 0
  %1981 = vmatprep.subr.bf16.mxu0 0
  %1982 = vmatpush1.bf16.msra.mxu0 0
  %1983 = vmatprep.subr.bf16.mxu0 0
  %1984 = vmatpush1.bf16.msra.mxu0 0
  %1985 = vmatprep.subr.bf16.mxu0 0
  %1986 = vmatpush1.bf16.msra.mxu0 0
  %1987 = vmatprep.mubr.bf16.mxu0 0
  %1988 = vmatmul.mubr.bf16.gmra.mrb[0].mxu0 %v1953
  %v1989 = vpop.f32.mrb[0].mxu0
  %v1990 = vadd.f32 0.0, %v1989
  %v1991 = vpop.f32.mrb[0].mxu0
  %v1992 = vpop.f32.mrb[0].mxu0
  %v1993 = vadd.f32 0.0, %v1992
  %v1994 = vpop.f32.mrb[0].mxu0
  %1995 = vdwg.mxu0
  %v1996 = vadd.f32 %v1233, %v1990
  %v1997 = vadd.f32 %v1236, %v1993
  %v1998 = vxor.u32 %v1996, 2147483648
  %v1999 = vxor.u32 %v1997, 2147483648
  %v2000 = vmul.f32 %v1998, 1.442695
  %v2001 = vpow.pop %v2000
  %v2002 = vmul.f32 %v1999, 1.442695
  %v2003 = vpow.pop %v2002
  %v2004 = vadd.f32 %v2001, 1.0
  %v2005 = vadd.f32 %v2003, 1.0
  %v2006 = vrcp.pop %v2004
  %v2007 = vmul.f32 1.0, %v2006
  %v2008 = vrcp.pop %v2005
  %v2009 = vmul.f32 1.0, %v2008
  %v2010 = vtanh.pop %v1996
  %v2011 = vtanh.pop %v1997
  %v2012 = vmul.f32 %v2007, %v1934
  %v2013 = vmul.f32 %v2009, %v1935
  %2016 = vrot.lane.b32.xlu0 %v2010, 32
  %v2017 = vpop.permute.xlu0 %2016
  %2018 = vrot.lane.b32.xlu0 %v2011, 32
  %v2019 = vpop.permute.xlu0 %2018
  %v2022 = vmul.f32 %v2007, %v2017
  %v2023 = vmul.f32 %v2009, %v2019
  %2026 = vrot.lane.b32.xlu0 %v2022, 32
  %v2027 = vpop.permute.xlu0 %2026
  %2028 = vrot.lane.b32.xlu0 %v2023, 32
  %v2029 = vpop.permute.xlu0 %2028
  %v2032 = vadd.f32 %v2012, %v2027
  %v2033 = vadd.f32 %v2013, %v2029
  %v2034 = vtanh.pop %v2032
  %v2035 = vtanh.pop %v2033
  %2038 = vrot.lane.b32.xlu0 %v2034, 32
  %v2039 = vpop.permute.xlu0 %2038
  %2040 = vrot.lane.b32.xlu0 %v2035, 32
  %v2041 = vpop.permute.xlu0 %2040
  %v2044 = vmul.f32 %v2007, %v2039
  %v2045 = vmul.f32 %v2009, %v2041
  %2048 = vrot.lane.b32.xlu0 %v2044, 64
  %v2049 = vpop.permute.xlu0 %2048
  %2050 = vrot.lane.b32.xlu0 %v2045, 64
  %v2051 = vpop.permute.xlu0 %2050
  %2054 = vst.msk [vmem:[%s1239] sm:$0xff] %vm251, %v2049
  %2055 = vst.msk [vmem:[%s1239 + $0x8] sm:$0xff] %vm251, %v2051
  %2058 = vrot.lane.b32.xlu0 %v2032, 96
  %v2059 = vpop.permute.xlu0 %2058
  %2060 = vrot.lane.b32.xlu0 %v2033, 96
  %v2061 = vpop.permute.xlu0 %2060
  %2064 = vst.msk [vmem:[%s1242] sm:$0xff] %vm251, %v2059
  %2065 = vst.msk [vmem:[%s1242 + $0x8] sm:$0xff] %vm251, %v2061
  // Predicated region
  $region30: #{fwd.1} parent=0 // pred_check
    %p2066 = pneg %p24
  $region31: #{fwd.1} parent=0 // pred_check_branch
    %2068 = sbr.rel (%p2066) target = $region33
  $region32: #{fwd.1} parent=0 // pred_region
    %v2069 = vpack.c.bf16 %v2045, %v2044
    %v2070 = vld [vmem:[%s4] sm:$0xf]
    %v2071 = vld [vmem:[%s4 + $0x4] sm:$0xf]
    %v2072 = vld [vmem:[%s4 + $0x8] sm:$0xf]
    %v2073 = vld [vmem:[%s4 + $0xc] sm:$0xf]
    %v2074 = vld [vmem:[%s5] sm:$0x1]
    %v2076 = vlaneseq
    %v2077 = vshrl.u32 %v2076, 7
    %v2078 = vsub.s32 0, %v2077
    %v2079 = vrot.slane %v2074, %v2078
    %2082 = vrot.lane.b32.xlu0 %v2069, 64
    %v2083 = vpop.permute.xlu0 %2082
    %v2088 = vunpack.c.l.b16 %v2070
    %v2089 = vunpack.c.l.b16 %v2071
    %v2090 = vunpack.c.l.b16 %v2072
    %v2091 = vunpack.c.l.b16 %v2073
    %v2092 = vpack.c.b16 %v2089, %v2088
    %v2093 = vpack.c.b16 %v2091, %v2090
    %v2097 = vsel %vm251, %v2083, 0
    %2099 = vmatprep.subr.bf16.mxu0 0
    %2100 = vmatpush1.bf16.msra.mxu0 %v2092
    %2101 = vmatprep.subr.bf16.mxu0 0
    %2102 = vmatpush1.bf16.msra.mxu0 %v2093
    %2103 = vmatprep.subr.bf16.mxu0 0
    %2104 = vmatpush1.bf16.msra.mxu0 0
    %2105 = vmatprep.subr.bf16.mxu0 0
    %2106 = vmatpush1.bf16.msra.mxu0 0
    %2107 = vmatprep.subr.bf16.mxu0 0
    %2108 = vmatpush1.bf16.msra.mxu0 0
    %2109 = vmatprep.subr.bf16.mxu0 0
    %2110 = vmatpush1.bf16.msra.mxu0 0
    %2111 = vmatprep.subr.bf16.mxu0 0
    %2112 = vmatpush1.bf16.msra.mxu0 0
    %2113 = vmatprep.subr.bf16.mxu0 0
    %2114 = vmatpush1.bf16.msra.mxu0 0
    %2115 = vmatprep.subr.bf16.mxu0 0
    %2116 = vmatpush1.bf16.msra.mxu0 0
    %2117 = vmatprep.subr.bf16.mxu0 0
    %2118 = vmatpush1.bf16.msra.mxu0 0
    %2119 = vmatprep.subr.bf16.mxu0 0
    %2120 = vmatpush1.bf16.msra.mxu0 0
    %2121 = vmatprep.subr.bf16.mxu0 0
    %2122 = vmatpush1.bf16.msra.mxu0 0
    %2123 = vmatprep.subr.bf16.mxu0 0
    %2124 = vmatpush1.bf16.msra.mxu0 0
    %2125 = vmatprep.subr.bf16.mxu0 0
    %2126 = vmatpush1.bf16.msra.mxu0 0
    %2127 = vmatprep.subr.bf16.mxu0 0
    %2128 = vmatpush1.bf16.msra.mxu0 0
    %2129 = vmatprep.subr.bf16.mxu0 0
    %2130 = vmatpush1.bf16.msra.mxu0 0
    %2131 = vmatprep.mubr.bf16.mxu0 0
    %2132 = vmatmul.mubr.bf16.gmra.mrb[0].mxu0 %v2097
    %v2133 = vpop.f32.mrb[0].mxu0
    %v2134 = vadd.f32 %v2079, %v2133
    %v2135 = vpop.f32.mrb[0].mxu0
    %v2136 = vpop.f32.mrb[0].mxu0
    %v2137 = vadd.f32 %v2079, %v2136
    %v2138 = vpop.f32.mrb[0].mxu0
    %2139 = vdwg.mxu0
    %2140 = vst [vmem:[%s6] sm:$0xff] %v2134
    %2141 = vst [vmem:[%s6 + $0x8] sm:$0xff] %v2137
  $region33: #{fwd.1} parent=0 // pred_fallthru
    _
  // Predicated region
  $region34: #{fwd.1} parent=0 // pred_check
    _
  $region35: #{fwd.1} parent=0 // pred_check_branch
    %2143 = sbr.rel (0) target = $region37
  $region36: #{fwd.1} parent=0 // pred_region
    _
  $region37: #{fwd.1} parent=0 // pred_fallthru
    _
  // Predicated region
  $region38: #{fwd.1} parent=0 // pred_check
    _
  $region39: #{fwd.1} parent=0 // pred_check_branch
    %2145 = sbr.rel (0) target = $region41
  $region40: #{fwd.1} parent=0 // pred_region
    _
  $region41: #{fwd.1} parent=0 // pred_fallthru
    _

</llo_original>
